<compile_context>
chip_gen: v7x
topology: tpu7x:2x2x1
jax: 0.10.0
libtpu: 0.0.40
codegen_flags: <defaults>
</compile_context>

<pallas_src>
import functools
import math

import jax
import jax.numpy as jnp
from jax.experimental import pallas as pl
from jax.experimental.pallas import tpu as pltpu

KSIZE = 7
PAD = 3


def _round_up(x, m):
    return (x + m - 1) // m * m


def _conv7x7_kernel(x_ref, w_ref, b_ref, o_ref, patch_ref, *,
                    tile_h, Wpp, Cin_pad, n_row_tiles):
    """One grid step: tile_h output rows of one batch image.

    x_ref     : (1, Cin_pad, (H+7)*Wpp)    flattened padded image (resident per n)
    w_ref     : (Cout_pad, 49*Cin_pad)     packed weights (VMEM-resident)
    b_ref     : (Cout_pad, 1)
    o_ref     : (1, Cout_pad, tile_h*Wpp)  lane-dense flattened output block
    patch_ref : (49*Cin_pad, tile_h*Wpp)   im2col scratch
    """
    S = tile_h * Wpp

    if n_row_tiles == 1:
        base = 0                                          # fully static indexing
    else:
        # tile_h*Wpp is guaranteed a multiple of 128 whenever n_row_tiles > 1.
        base = pl.multiple_of(pl.program_id(1) * S, 128)

    # Single slab load hoists all dynamic indexing for this tile.
    slab = x_ref[0, :, pl.ds(base, (tile_h + KSIZE) * Wpp)]   # (Cin_pad, (tile_h+7)*Wpp)

    # 49 per-tap writes: each is a static lane slice of the slab stored into an
    # 8-sublane-aligned, full-lane-width row group of the im2col patch.
    for kh in range(KSIZE):
        for kw in range(KSIZE):
            k0 = (kh * KSIZE + kw) * Cin_pad
            off = kh * Wpp + kw
            patch_ref[k0:k0 + Cin_pad, :] = slab[:, off:off + S]

    # One packed MXU matmul: (Cout_pad, K) @ (K, S), f32 accumulation.
    acc = jnp.dot(w_ref[...], patch_ref[...], preferred_element_type=jnp.float32)
    acc = acc + b_ref[...].astype(jnp.float32)       # (Cout_pad, 1) broadcasts over lanes
    o_ref[0, :, :] = acc.astype(o_ref.dtype)


def _choose_tiling(H, W, K, itemsize, patch_budget_bytes=4 * 1024 * 1024):
    """Pick (tile_h, Wpp): tile_h | H, tile_h*Wpp % 128 == 0, patch fits budget."""
    for align in (32, 64, 128):
        Wpp = _round_up(W + 2 * PAD, align)
        g = 128 // math.gcd(Wpp, 128)        # tile_h must be a multiple of g
        divs = [d for d in range(1, H + 1)
                if H % d == 0 and d % g == 0
                and K * d * Wpp * itemsize <= patch_budget_bytes]
        if divs:
            return max(divs), Wpp
    # Fallback (e.g. prime H with huge W): single tile over all of H; the out
    # block's last dim then equals the full array dim, so the (8,128) BlockSpec
    # rule is satisfied via the full-dim exemption (stores may be partly masked).
    return H, _round_up(W + 2 * PAD, 8)


def feature_map_block(x_nchw, weight, bias, *, matmul_dtype=jnp.float32):
    """Conv2d(Cin, Cout, kernel_size=7, padding=3, padding_mode='reflect').

    x_nchw : (N, Cin, H, W)      float32
    weight : (Cout, Cin, 7, 7)   float32  (PyTorch layout)
    bias   : (Cout,)             float32
    returns: (N, Cout, H, W)

    matmul_dtype: dtype of the MXU operands (im2col patch & weights).  Keep
    float32 for reference-faithful numerics; pass jnp.bfloat16 on v5e/v6e for
    the fast MXU path (accumulation stays float32 either way).
    """
    N, Cin, H, W = x_nchw.shape
    Cout = weight.shape[0]
    assert H > PAD and W > PAD, "reflect padding requires H, W >= 4"

    itemsize = jnp.dtype(matmul_dtype).itemsize
    sub = 8 * (4 // itemsize)                 # sublane granule: 8 (f32), 16 (bf16)
    Cin_pad = _round_up(Cin, sub)
    Cout_pad = _round_up(Cout, 8)
    K = KSIZE * KSIZE * Cin_pad

    tile_h, Wpp = _choose_tiling(H, W, K, itemsize)
    n_t = H // tile_h
    S = tile_h * Wpp
    assert (S % 128 == 0) or (tile_h == H), "output lane dim must be lane-dense"

    Hp = H + 2 * PAD
    L = (Hp + 1) * Wpp    # +1 zero row keeps the last tile's shifted slab reads in bounds

    # Reflect-pad spatial dims directly in NCHW (kernel is channels-first, so no
    # layout transposes are needed anywhere).
    # TODO(synk): fold the reflect padding into the kernel's slab indexing
    # (mirrored row offsets) to remove this extra HBM round trip of the input.
    x_pad = jnp.pad(x_nchw, ((0, 0), (0, 0), (PAD, PAD), (PAD, PAD)),
                    mode="reflect")                                   # (N, Cin, H+6, W+6)
    # Zero-pad channels -> Cin_pad, width -> row stride Wpp, one extra bottom
    # row, then flatten spatial: every 7x7 tap becomes a contiguous lane slice.
    x_pad = jnp.pad(x_pad, ((0, 0), (0, Cin_pad - Cin), (0, 1),
                            (0, Wpp - (W + 2 * PAD))))                # (N, Cin_pad, H+7, Wpp)
    x_flat = x_pad.reshape(N, Cin_pad, L).astype(matmul_dtype)        # cast once here

    # Weights -> lane-dense (Cout_pad, 49*Cin_pad) with k = (kh*7 + kw)*Cin_pad + ci
    # (matches the patch layout built in the kernel); extra rows/cols are zero.
    w_perm = jnp.transpose(weight, (0, 2, 3, 1))                      # (Cout, 7, 7, Cin)
    w_perm = jnp.pad(w_perm, ((0, Cout_pad - Cout), (0, 0), (0, 0),
                              (0, Cin_pad - Cin)))
    w_mat = w_perm.reshape(Cout_pad, K).astype(matmul_dtype)
    b2d = jnp.pad(bias, (0, Cout_pad - Cout)).reshape(Cout_pad, 1).astype(jnp.float32)

    kernel = functools.partial(_conv7x7_kernel, tile_h=tile_h, Wpp=Wpp,
                               Cin_pad=Cin_pad, n_row_tiles=n_t)

    out_flat = pl.pallas_call(
        kernel,
        out_shape=jax.ShapeDtypeStruct((N, Cout_pad, H * Wpp), jnp.float32),
        grid_spec=pltpu.PrefetchScalarGridSpec(
            num_scalar_prefetch=0,
            grid=(N, n_t),
            in_specs=[
                # Full flattened padded image for batch n; block index does not
                # depend on t, so it stays VMEM-resident across row tiles.
                pl.BlockSpec((1, Cin_pad, L), lambda n, t: (n, 0, 0)),
                # Packed weights / bias: constant index -> resident across the
                # whole grid.  (pl.Buffered(1) would drop their 2nd pipeline
                # buffer, ~13 KB; omitted to keep lowering simple.)
                pl.BlockSpec((Cout_pad, K), lambda n, t: (0, 0)),
                pl.BlockSpec((Cout_pad, 1), lambda n, t: (0, 0)),
            ],
            out_specs=pl.BlockSpec((1, Cout_pad, S), lambda n, t: (n, 0, t)),
            scratch_shapes=[pltpu.VMEM((K, S), matmul_dtype)],
        ),
        compiler_params=pltpu.CompilerParams(
            dimension_semantics=("parallel", "parallel"),
            vmem_limit_bytes=32 * 1024 * 1024,
        ),
    )(x_flat, w_mat, b2d)

    # HBM-level reshape + slice: drop padded output channels / garbage columns.
    out = out_flat.reshape(N, Cout_pad, H, Wpp)[:, :Cout, :, :W]
    return out.astype(x_nchw.dtype)


def _reference(x_nchw, weight, bias):
    # Pure-JAX reference: reflect pad + lax conv (VALID), NCHW layout.
    x_pad = jnp.pad(x_nchw, ((0, 0), (0, 0), (PAD, PAD), (PAD, PAD)),
                    mode="reflect")
    out = jax.lax.conv_general_dilated(
        x_pad, weight, window_strides=(1, 1), padding="VALID",
        dimension_numbers=("NCHW", "OIHW", "NCHW"))
    return out + bias[None, :, None, None]


if __name__ == "__main__":
    # Small shapes consistent with the module: batch=2, Cin=4, Cout=8, 16x16.
    N, Cin, Cout, H, W = 2, 4, 8, 16, 16

    key = jax.random.PRNGKey(0)
    kx, kw_, kb = jax.random.split(key, 3)

    x = jax.random.normal(kx, (N, Cin, H, W), dtype=jnp.float32)
    # Deterministic parameter init (PyTorch-style uniform bound 1/sqrt(fan_in)).
    fan_in = Cin * KSIZE * KSIZE
    bound = 1.0 / (fan_in ** 0.5)
    weight = jax.random.uniform(
        kw_, (Cout, Cin, KSIZE, KSIZE), minval=-bound, maxval=bound,
        dtype=jnp.float32)
    bias = jax.random.uniform(
        kb, (Cout,), minval=-bound, maxval=bound, dtype=jnp.float32)

    out = feature_map_block(x, weight, bias)
    out = jax.block_until_ready(out)

    ref = _reference(x, weight, bias)
    assert out.shape == (N, Cout, H, W)
    assert jnp.allclose(out, ref, atol=1e-4, rtol=1e-4), "mismatch vs reference"

    print("KERNEL_OK")
</pallas_src>

<mosaic_0001>
module attributes {stable_mosaic.version = 11 : i64} {
  func.func @_conv7x7_kernel(%arg0: i32, %arg1: i32, %arg2: memref<1x8x736xf32, #tpu.memory_space<vmem>>, %arg3: memref<8x392xf32, #tpu.memory_space<vmem>>, %arg4: memref<8x1xf32, #tpu.memory_space<vmem>>, %arg5: memref<1x8x512xf32, #tpu.memory_space<vmem>>, %arg6: memref<392x512xf32, #tpu.memory_space<vmem>>) attributes {dimension_semantics = [#tpu.dimension_semantics<parallel>, #tpu.dimension_semantics<parallel>], iteration_bounds = array<i64: 2, 1>, scalar_prefetch = 0 : i64, scratch_operands = 1 : i64, tpu.core_type = #tpu.core_type<tc>, window_params = [{transform_indices = @transform_0, window_bounds = array<i64: 1, 8, 736>}, {pipeline_mode = #tpu.pipeline_mode<synchronous>, transform_indices = @transform_1, window_bounds = array<i64: 8, 392>}, {pipeline_mode = #tpu.pipeline_mode<synchronous>, transform_indices = @transform_2, window_bounds = array<i64: 8, 1>}, {transform_indices = @transform_3, window_bounds = array<i64: 1, 8, 512>}]} {
    %c0 = arith.constant 0 : index
    %c0_0 = arith.constant 0 : index
    %c0_1 = arith.constant 0 : index
    %0 = vector.load %arg2[%c0, %c0_0, %c0_1] : memref<1x8x736xf32, #tpu.memory_space<vmem>>, vector<1x8x736xf32>
    %1 = vector.shape_cast %0 : vector<1x8x736xf32> to vector<8x736xf32>
    %2 = vector.extract_strided_slice %1 {offsets = [0, 0], sizes = [8, 512], strides = [1, 1]} : vector<8x736xf32> to vector<8x512xf32>
    %c0_2 = arith.constant 0 : index
    %c0_3 = arith.constant 0 : index
    %3 = vector.load %arg6[%c0_2, %c0_3] : memref<392x512xf32, #tpu.memory_space<vmem>>, vector<8x512xf32>
    tpu.vector_store %arg6[%c0_2, %c0_3], %2 {strides = array<i32>} : memref<392x512xf32, #tpu.memory_space<vmem>>, vector<8x512xf32>,
    %4 = vector.extract_strided_slice %1 {offsets = [0, 1], sizes = [8, 512], strides = [1, 1]} : vector<8x736xf32> to vector<8x512xf32>
    %c8 = arith.constant 8 : index
    %c0_4 = arith.constant 0 : index
    %5 = vector.load %arg6[%c8, %c0_4] : memref<392x512xf32, #tpu.memory_space<vmem>>, vector<8x512xf32>
    tpu.vector_store %arg6[%c8, %c0_4], %4 {strides = array<i32>} : memref<392x512xf32, #tpu.memory_space<vmem>>, vector<8x512xf32>,
    %6 = vector.extract_strided_slice %1 {offsets = [0, 2], sizes = [8, 512], strides = [1, 1]} : vector<8x736xf32> to vector<8x512xf32>
    %c16 = arith.constant 16 : index
    %c0_5 = arith.constant 0 : index
    %7 = vector.load %arg6[%c16, %c0_5] : memref<392x512xf32, #tpu.memory_space<vmem>>, vector<8x512xf32>
    tpu.vector_store %arg6[%c16, %c0_5], %6 {strides = array<i32>} : memref<392x512xf32, #tpu.memory_space<vmem>>, vector<8x512xf32>,
    %8 = vector.extract_strided_slice %1 {offsets = [0, 3], sizes = [8, 512], strides = [1, 1]} : vector<8x736xf32> to vector<8x512xf32>
    %c24 = arith.constant 24 : index
    %c0_6 = arith.constant 0 : index
    %9 = vector.load %arg6[%c24, %c0_6] : memref<392x512xf32, #tpu.memory_space<vmem>>, vector<8x512xf32>
    tpu.vector_store %arg6[%c24, %c0_6], %8 {strides = array<i32>} : memref<392x512xf32, #tpu.memory_space<vmem>>, vector<8x512xf32>,
    %10 = vector.extract_strided_slice %1 {offsets = [0, 4], sizes = [8, 512], strides = [1, 1]} : vector<8x736xf32> to vector<8x512xf32>
    %c32 = arith.constant 32 : index
    %c0_7 = arith.constant 0 : index
    %11 = vector.load %arg6[%c32, %c0_7] : memref<392x512xf32, #tpu.memory_space<vmem>>, vector<8x512xf32>
    tpu.vector_store %arg6[%c32, %c0_7], %10 {strides = array<i32>} : memref<392x512xf32, #tpu.memory_space<vmem>>, vector<8x512xf32>,
    %12 = vector.extract_strided_slice %1 {offsets = [0, 5], sizes = [8, 512], strides = [1, 1]} : vector<8x736xf32> to vector<8x512xf32>
    %c40 = arith.constant 40 : index
    %c0_8 = arith.constant 0 : index
    %13 = vector.load %arg6[%c40, %c0_8] : memref<392x512xf32, #tpu.memory_space<vmem>>, vector<8x512xf32>
    tpu.vector_store %arg6[%c40, %c0_8], %12 {strides = array<i32>} : memref<392x512xf32, #tpu.memory_space<vmem>>, vector<8x512xf32>,
    %14 = vector.extract_strided_slice %1 {offsets = [0, 6], sizes = [8, 512], strides = [1, 1]} : vector<8x736xf32> to vector<8x512xf32>
    %c48 = arith.constant 48 : index
    %c0_9 = arith.constant 0 : index
    %15 = vector.load %arg6[%c48, %c0_9] : memref<392x512xf32, #tpu.memory_space<vmem>>, vector<8x512xf32>
    tpu.vector_store %arg6[%c48, %c0_9], %14 {strides = array<i32>} : memref<392x512xf32, #tpu.memory_space<vmem>>, vector<8x512xf32>,
    %16 = vector.extract_strided_slice %1 {offsets = [0, 32], sizes = [8, 512], strides = [1, 1]} : vector<8x736xf32> to vector<8x512xf32>
    %c56 = arith.constant 56 : index
    %c0_10 = arith.constant 0 : index
    %17 = vector.load %arg6[%c56, %c0_10] : memref<392x512xf32, #tpu.memory_space<vmem>>, vector<8x512xf32>
    tpu.vector_store %arg6[%c56, %c0_10], %16 {strides = array<i32>} : memref<392x512xf32, #tpu.memory_space<vmem>>, vector<8x512xf32>,
    %18 = vector.extract_strided_slice %1 {offsets = [0, 33], sizes = [8, 512], strides = [1, 1]} : vector<8x736xf32> to vector<8x512xf32>
    %c64 = arith.constant 64 : index
    %c0_11 = arith.constant 0 : index
    %19 = vector.load %arg6[%c64, %c0_11] : memref<392x512xf32, #tpu.memory_space<vmem>>, vector<8x512xf32>
    tpu.vector_store %arg6[%c64, %c0_11], %18 {strides = array<i32>} : memref<392x512xf32, #tpu.memory_space<vmem>>, vector<8x512xf32>,
    %20 = vector.extract_strided_slice %1 {offsets = [0, 34], sizes = [8, 512], strides = [1, 1]} : vector<8x736xf32> to vector<8x512xf32>
    %c72 = arith.constant 72 : index
    %c0_12 = arith.constant 0 : index
    %21 = vector.load %arg6[%c72, %c0_12] : memref<392x512xf32, #tpu.memory_space<vmem>>, vector<8x512xf32>
    tpu.vector_store %arg6[%c72, %c0_12], %20 {strides = array<i32>} : memref<392x512xf32, #tpu.memory_space<vmem>>, vector<8x512xf32>,
    %22 = vector.extract_strided_slice %1 {offsets = [0, 35], sizes = [8, 512], strides = [1, 1]} : vector<8x736xf32> to vector<8x512xf32>
    %c80 = arith.constant 80 : index
    %c0_13 = arith.constant 0 : index
    %23 = vector.load %arg6[%c80, %c0_13] : memref<392x512xf32, #tpu.memory_space<vmem>>, vector<8x512xf32>
    tpu.vector_store %arg6[%c80, %c0_13], %22 {strides = array<i32>} : memref<392x512xf32, #tpu.memory_space<vmem>>, vector<8x512xf32>,
    %24 = vector.extract_strided_slice %1 {offsets = [0, 36], sizes = [8, 512], strides = [1, 1]} : vector<8x736xf32> to vector<8x512xf32>
    %c88 = arith.constant 88 : index
    %c0_14 = arith.constant 0 : index
    %25 = vector.load %arg6[%c88, %c0_14] : memref<392x512xf32, #tpu.memory_space<vmem>>, vector<8x512xf32>
    tpu.vector_store %arg6[%c88, %c0_14], %24 {strides = array<i32>} : memref<392x512xf32, #tpu.memory_space<vmem>>, vector<8x512xf32>,
    %26 = vector.extract_strided_slice %1 {offsets = [0, 37], sizes = [8, 512], strides = [1, 1]} : vector<8x736xf32> to vector<8x512xf32>
    %c96 = arith.constant 96 : index
    %c0_15 = arith.constant 0 : index
    %27 = vector.load %arg6[%c96, %c0_15] : memref<392x512xf32, #tpu.memory_space<vmem>>, vector<8x512xf32>
    tpu.vector_store %arg6[%c96, %c0_15], %26 {strides = array<i32>} : memref<392x512xf32, #tpu.memory_space<vmem>>, vector<8x512xf32>,
    %28 = vector.extract_strided_slice %1 {offsets = [0, 38], sizes = [8, 512], strides = [1, 1]} : vector<8x736xf32> to vector<8x512xf32>
    %c104 = arith.constant 104 : index
    %c0_16 = arith.constant 0 : index
    %29 = vector.load %arg6[%c104, %c0_16] : memref<392x512xf32, #tpu.memory_space<vmem>>, vector<8x512xf32>
    tpu.vector_store %arg6[%c104, %c0_16], %28 {strides = array<i32>} : memref<392x512xf32, #tpu.memory_space<vmem>>, vector<8x512xf32>,
    %30 = vector.extract_strided_slice %1 {offsets = [0, 64], sizes = [8, 512], strides = [1, 1]} : vector<8x736xf32> to vector<8x512xf32>
    %c112 = arith.constant 112 : index
    %c0_17 = arith.constant 0 : index
    %31 = vector.load %arg6[%c112, %c0_17] : memref<392x512xf32, #tpu.memory_space<vmem>>, vector<8x512xf32>
    tpu.vector_store %arg6[%c112, %c0_17], %30 {strides = array<i32>} : memref<392x512xf32, #tpu.memory_space<vmem>>, vector<8x512xf32>,
    %32 = vector.extract_strided_slice %1 {offsets = [0, 65], sizes = [8, 512], strides = [1, 1]} : vector<8x736xf32> to vector<8x512xf32>
    %c120 = arith.constant 120 : index
    %c0_18 = arith.constant 0 : index
    %33 = vector.load %arg6[%c120, %c0_18] : memref<392x512xf32, #tpu.memory_space<vmem>>, vector<8x512xf32>
    tpu.vector_store %arg6[%c120, %c0_18], %32 {strides = array<i32>} : memref<392x512xf32, #tpu.memory_space<vmem>>, vector<8x512xf32>,
    %34 = vector.extract_strided_slice %1 {offsets = [0, 66], sizes = [8, 512], strides = [1, 1]} : vector<8x736xf32> to vector<8x512xf32>
    %c128 = arith.constant 128 : index
    %c0_19 = arith.constant 0 : index
    %35 = vector.load %arg6[%c128, %c0_19] : memref<392x512xf32, #tpu.memory_space<vmem>>, vector<8x512xf32>
    tpu.vector_store %arg6[%c128, %c0_19], %34 {strides = array<i32>} : memref<392x512xf32, #tpu.memory_space<vmem>>, vector<8x512xf32>,
    %36 = vector.extract_strided_slice %1 {offsets = [0, 67], sizes = [8, 512], strides = [1, 1]} : vector<8x736xf32> to vector<8x512xf32>
    %c136 = arith.constant 136 : index
    %c0_20 = arith.constant 0 : index
    %37 = vector.load %arg6[%c136, %c0_20] : memref<392x512xf32, #tpu.memory_space<vmem>>, vector<8x512xf32>
    tpu.vector_store %arg6[%c136, %c0_20], %36 {strides = array<i32>} : memref<392x512xf32, #tpu.memory_space<vmem>>, vector<8x512xf32>,
    %38 = vector.extract_strided_slice %1 {offsets = [0, 68], sizes = [8, 512], strides = [1, 1]} : vector<8x736xf32> to vector<8x512xf32>
    %c144 = arith.constant 144 : index
    %c0_21 = arith.constant 0 : index
    %39 = vector.load %arg6[%c144, %c0_21] : memref<392x512xf32, #tpu.memory_space<vmem>>, vector<8x512xf32>
    tpu.vector_store %arg6[%c144, %c0_21], %38 {strides = array<i32>} : memref<392x512xf32, #tpu.memory_space<vmem>>, vector<8x512xf32>,
    %40 = vector.extract_strided_slice %1 {offsets = [0, 69], sizes = [8, 512], strides = [1, 1]} : vector<8x736xf32> to vector<8x512xf32>
    %c152 = arith.constant 152 : index
    %c0_22 = arith.constant 0 : index
    %41 = vector.load %arg6[%c152, %c0_22] : memref<392x512xf32, #tpu.memory_space<vmem>>, vector<8x512xf32>
    tpu.vector_store %arg6[%c152, %c0_22], %40 {strides = array<i32>} : memref<392x512xf32, #tpu.memory_space<vmem>>, vector<8x512xf32>,
    %42 = vector.extract_strided_slice %1 {offsets = [0, 70], sizes = [8, 512], strides = [1, 1]} : vector<8x736xf32> to vector<8x512xf32>
    %c160 = arith.constant 160 : index
    %c0_23 = arith.constant 0 : index
    %43 = vector.load %arg6[%c160, %c0_23] : memref<392x512xf32, #tpu.memory_space<vmem>>, vector<8x512xf32>
    tpu.vector_store %arg6[%c160, %c0_23], %42 {strides = array<i32>} : memref<392x512xf32, #tpu.memory_space<vmem>>, vector<8x512xf32>,
    %44 = vector.extract_strided_slice %1 {offsets = [0, 96], sizes = [8, 512], strides = [1, 1]} : vector<8x736xf32> to vector<8x512xf32>
    %c168 = arith.constant 168 : index
    %c0_24 = arith.constant 0 : index
    %45 = vector.load %arg6[%c168, %c0_24] : memref<392x512xf32, #tpu.memory_space<vmem>>, vector<8x512xf32>
    tpu.vector_store %arg6[%c168, %c0_24], %44 {strides = array<i32>} : memref<392x512xf32, #tpu.memory_space<vmem>>, vector<8x512xf32>,
    %46 = vector.extract_strided_slice %1 {offsets = [0, 97], sizes = [8, 512], strides = [1, 1]} : vector<8x736xf32> to vector<8x512xf32>
    %c176 = arith.constant 176 : index
    %c0_25 = arith.constant 0 : index
    %47 = vector.load %arg6[%c176, %c0_25] : memref<392x512xf32, #tpu.memory_space<vmem>>, vector<8x512xf32>
    tpu.vector_store %arg6[%c176, %c0_25], %46 {strides = array<i32>} : memref<392x512xf32, #tpu.memory_space<vmem>>, vector<8x512xf32>,
    %48 = vector.extract_strided_slice %1 {offsets = [0, 98], sizes = [8, 512], strides = [1, 1]} : vector<8x736xf32> to vector<8x512xf32>
    %c184 = arith.constant 184 : index
    %c0_26 = arith.constant 0 : index
    %49 = vector.load %arg6[%c184, %c0_26] : memref<392x512xf32, #tpu.memory_space<vmem>>, vector<8x512xf32>
    tpu.vector_store %arg6[%c184, %c0_26], %48 {strides = array<i32>} : memref<392x512xf32, #tpu.memory_space<vmem>>, vector<8x512xf32>,
    %50 = vector.extract_strided_slice %1 {offsets = [0, 99], sizes = [8, 512], strides = [1, 1]} : vector<8x736xf32> to vector<8x512xf32>
    %c192 = arith.constant 192 : index
    %c0_27 = arith.constant 0 : index
    %51 = vector.load %arg6[%c192, %c0_27] : memref<392x512xf32, #tpu.memory_space<vmem>>, vector<8x512xf32>
    tpu.vector_store %arg6[%c192, %c0_27], %50 {strides = array<i32>} : memref<392x512xf32, #tpu.memory_space<vmem>>, vector<8x512xf32>,
    %52 = vector.extract_strided_slice %1 {offsets = [0, 100], sizes = [8, 512], strides = [1, 1]} : vector<8x736xf32> to vector<8x512xf32>
    %c200 = arith.constant 200 : index
    %c0_28 = arith.constant 0 : index
    %53 = vector.load %arg6[%c200, %c0_28] : memref<392x512xf32, #tpu.memory_space<vmem>>, vector<8x512xf32>
    tpu.vector_store %arg6[%c200, %c0_28], %52 {strides = array<i32>} : memref<392x512xf32, #tpu.memory_space<vmem>>, vector<8x512xf32>,
    %54 = vector.extract_strided_slice %1 {offsets = [0, 101], sizes = [8, 512], strides = [1, 1]} : vector<8x736xf32> to vector<8x512xf32>
    %c208 = arith.constant 208 : index
    %c0_29 = arith.constant 0 : index
    %55 = vector.load %arg6[%c208, %c0_29] : memref<392x512xf32, #tpu.memory_space<vmem>>, vector<8x512xf32>
    tpu.vector_store %arg6[%c208, %c0_29], %54 {strides = array<i32>} : memref<392x512xf32, #tpu.memory_space<vmem>>, vector<8x512xf32>,
    %56 = vector.extract_strided_slice %1 {offsets = [0, 102], sizes = [8, 512], strides = [1, 1]} : vector<8x736xf32> to vector<8x512xf32>
    %c216 = arith.constant 216 : index
    %c0_30 = arith.constant 0 : index
    %57 = vector.load %arg6[%c216, %c0_30] : memref<392x512xf32, #tpu.memory_space<vmem>>, vector<8x512xf32>
    tpu.vector_store %arg6[%c216, %c0_30], %56 {strides = array<i32>} : memref<392x512xf32, #tpu.memory_space<vmem>>, vector<8x512xf32>,
    %58 = vector.extract_strided_slice %1 {offsets = [0, 128], sizes = [8, 512], strides = [1, 1]} : vector<8x736xf32> to vector<8x512xf32>
    %c224 = arith.constant 224 : index
    %c0_31 = arith.constant 0 : index
    %59 = vector.load %arg6[%c224, %c0_31] : memref<392x512xf32, #tpu.memory_space<vmem>>, vector<8x512xf32>
    tpu.vector_store %arg6[%c224, %c0_31], %58 {strides = array<i32>} : memref<392x512xf32, #tpu.memory_space<vmem>>, vector<8x512xf32>,
    %60 = vector.extract_strided_slice %1 {offsets = [0, 129], sizes = [8, 512], strides = [1, 1]} : vector<8x736xf32> to vector<8x512xf32>
    %c232 = arith.constant 232 : index
    %c0_32 = arith.constant 0 : index
    %61 = vector.load %arg6[%c232, %c0_32] : memref<392x512xf32, #tpu.memory_space<vmem>>, vector<8x512xf32>
    tpu.vector_store %arg6[%c232, %c0_32], %60 {strides = array<i32>} : memref<392x512xf32, #tpu.memory_space<vmem>>, vector<8x512xf32>,
    %62 = vector.extract_strided_slice %1 {offsets = [0, 130], sizes = [8, 512], strides = [1, 1]} : vector<8x736xf32> to vector<8x512xf32>
    %c240 = arith.constant 240 : index
    %c0_33 = arith.constant 0 : index
    %63 = vector.load %arg6[%c240, %c0_33] : memref<392x512xf32, #tpu.memory_space<vmem>>, vector<8x512xf32>
    tpu.vector_store %arg6[%c240, %c0_33], %62 {strides = array<i32>} : memref<392x512xf32, #tpu.memory_space<vmem>>, vector<8x512xf32>,
    %64 = vector.extract_strided_slice %1 {offsets = [0, 131], sizes = [8, 512], strides = [1, 1]} : vector<8x736xf32> to vector<8x512xf32>
    %c248 = arith.constant 248 : index
    %c0_34 = arith.constant 0 : index
    %65 = vector.load %arg6[%c248, %c0_34] : memref<392x512xf32, #tpu.memory_space<vmem>>, vector<8x512xf32>
    tpu.vector_store %arg6[%c248, %c0_34], %64 {strides = array<i32>} : memref<392x512xf32, #tpu.memory_space<vmem>>, vector<8x512xf32>,
    %66 = vector.extract_strided_slice %1 {offsets = [0, 132], sizes = [8, 512], strides = [1, 1]} : vector<8x736xf32> to vector<8x512xf32>
    %c256 = arith.constant 256 : index
    %c0_35 = arith.constant 0 : index
    %67 = vector.load %arg6[%c256, %c0_35] : memref<392x512xf32, #tpu.memory_space<vmem>>, vector<8x512xf32>
    tpu.vector_store %arg6[%c256, %c0_35], %66 {strides = array<i32>} : memref<392x512xf32, #tpu.memory_space<vmem>>, vector<8x512xf32>,
    %68 = vector.extract_strided_slice %1 {offsets = [0, 133], sizes = [8, 512], strides = [1, 1]} : vector<8x736xf32> to vector<8x512xf32>
    %c264 = arith.constant 264 : index
    %c0_36 = arith.constant 0 : index
    %69 = vector.load %arg6[%c264, %c0_36] : memref<392x512xf32, #tpu.memory_space<vmem>>, vector<8x512xf32>
    tpu.vector_store %arg6[%c264, %c0_36], %68 {strides = array<i32>} : memref<392x512xf32, #tpu.memory_space<vmem>>, vector<8x512xf32>,
    %70 = vector.extract_strided_slice %1 {offsets = [0, 134], sizes = [8, 512], strides = [1, 1]} : vector<8x736xf32> to vector<8x512xf32>
    %c272 = arith.constant 272 : index
    %c0_37 = arith.constant 0 : index
    %71 = vector.load %arg6[%c272, %c0_37] : memref<392x512xf32, #tpu.memory_space<vmem>>, vector<8x512xf32>
    tpu.vector_store %arg6[%c272, %c0_37], %70 {strides = array<i32>} : memref<392x512xf32, #tpu.memory_space<vmem>>, vector<8x512xf32>,
    %72 = vector.extract_strided_slice %1 {offsets = [0, 160], sizes = [8, 512], strides = [1, 1]} : vector<8x736xf32> to vector<8x512xf32>
    %c280 = arith.constant 280 : index
    %c0_38 = arith.constant 0 : index
    %73 = vector.load %arg6[%c280, %c0_38] : memref<392x512xf32, #tpu.memory_space<vmem>>, vector<8x512xf32>
    tpu.vector_store %arg6[%c280, %c0_38], %72 {strides = array<i32>} : memref<392x512xf32, #tpu.memory_space<vmem>>, vector<8x512xf32>,
    %74 = vector.extract_strided_slice %1 {offsets = [0, 161], sizes = [8, 512], strides = [1, 1]} : vector<8x736xf32> to vector<8x512xf32>
    %c288 = arith.constant 288 : index
    %c0_39 = arith.constant 0 : index
    %75 = vector.load %arg6[%c288, %c0_39] : memref<392x512xf32, #tpu.memory_space<vmem>>, vector<8x512xf32>
    tpu.vector_store %arg6[%c288, %c0_39], %74 {strides = array<i32>} : memref<392x512xf32, #tpu.memory_space<vmem>>, vector<8x512xf32>,
    %76 = vector.extract_strided_slice %1 {offsets = [0, 162], sizes = [8, 512], strides = [1, 1]} : vector<8x736xf32> to vector<8x512xf32>
    %c296 = arith.constant 296 : index
    %c0_40 = arith.constant 0 : index
    %77 = vector.load %arg6[%c296, %c0_40] : memref<392x512xf32, #tpu.memory_space<vmem>>, vector<8x512xf32>
    tpu.vector_store %arg6[%c296, %c0_40], %76 {strides = array<i32>} : memref<392x512xf32, #tpu.memory_space<vmem>>, vector<8x512xf32>,
    %78 = vector.extract_strided_slice %1 {offsets = [0, 163], sizes = [8, 512], strides = [1, 1]} : vector<8x736xf32> to vector<8x512xf32>
    %c304 = arith.constant 304 : index
    %c0_41 = arith.constant 0 : index
    %79 = vector.load %arg6[%c304, %c0_41] : memref<392x512xf32, #tpu.memory_space<vmem>>, vector<8x512xf32>
    tpu.vector_store %arg6[%c304, %c0_41], %78 {strides = array<i32>} : memref<392x512xf32, #tpu.memory_space<vmem>>, vector<8x512xf32>,
    %80 = vector.extract_strided_slice %1 {offsets = [0, 164], sizes = [8, 512], strides = [1, 1]} : vector<8x736xf32> to vector<8x512xf32>
    %c312 = arith.constant 312 : index
    %c0_42 = arith.constant 0 : index
    %81 = vector.load %arg6[%c312, %c0_42] : memref<392x512xf32, #tpu.memory_space<vmem>>, vector<8x512xf32>
    tpu.vector_store %arg6[%c312, %c0_42], %80 {strides = array<i32>} : memref<392x512xf32, #tpu.memory_space<vmem>>, vector<8x512xf32>,
    %82 = vector.extract_strided_slice %1 {offsets = [0, 165], sizes = [8, 512], strides = [1, 1]} : vector<8x736xf32> to vector<8x512xf32>
    %c320 = arith.constant 320 : index
    %c0_43 = arith.constant 0 : index
    %83 = vector.load %arg6[%c320, %c0_43] : memref<392x512xf32, #tpu.memory_space<vmem>>, vector<8x512xf32>
    tpu.vector_store %arg6[%c320, %c0_43], %82 {strides = array<i32>} : memref<392x512xf32, #tpu.memory_space<vmem>>, vector<8x512xf32>,
    %84 = vector.extract_strided_slice %1 {offsets = [0, 166], sizes = [8, 512], strides = [1, 1]} : vector<8x736xf32> to vector<8x512xf32>
    %c328 = arith.constant 328 : index
    %c0_44 = arith.constant 0 : index
    %85 = vector.load %arg6[%c328, %c0_44] : memref<392x512xf32, #tpu.memory_space<vmem>>, vector<8x512xf32>
    tpu.vector_store %arg6[%c328, %c0_44], %84 {strides = array<i32>} : memref<392x512xf32, #tpu.memory_space<vmem>>, vector<8x512xf32>,
    %86 = vector.extract_strided_slice %1 {offsets = [0, 192], sizes = [8, 512], strides = [1, 1]} : vector<8x736xf32> to vector<8x512xf32>
    %c336 = arith.constant 336 : index
    %c0_45 = arith.constant 0 : index
    %87 = vector.load %arg6[%c336, %c0_45] : memref<392x512xf32, #tpu.memory_space<vmem>>, vector<8x512xf32>
    tpu.vector_store %arg6[%c336, %c0_45], %86 {strides = array<i32>} : memref<392x512xf32, #tpu.memory_space<vmem>>, vector<8x512xf32>,
    %88 = vector.extract_strided_slice %1 {offsets = [0, 193], sizes = [8, 512], strides = [1, 1]} : vector<8x736xf32> to vector<8x512xf32>
    %c344 = arith.constant 344 : index
    %c0_46 = arith.constant 0 : index
    %89 = vector.load %arg6[%c344, %c0_46] : memref<392x512xf32, #tpu.memory_space<vmem>>, vector<8x512xf32>
    tpu.vector_store %arg6[%c344, %c0_46], %88 {strides = array<i32>} : memref<392x512xf32, #tpu.memory_space<vmem>>, vector<8x512xf32>,
    %90 = vector.extract_strided_slice %1 {offsets = [0, 194], sizes = [8, 512], strides = [1, 1]} : vector<8x736xf32> to vector<8x512xf32>
    %c352 = arith.constant 352 : index
    %c0_47 = arith.constant 0 : index
    %91 = vector.load %arg6[%c352, %c0_47] : memref<392x512xf32, #tpu.memory_space<vmem>>, vector<8x512xf32>
    tpu.vector_store %arg6[%c352, %c0_47], %90 {strides = array<i32>} : memref<392x512xf32, #tpu.memory_space<vmem>>, vector<8x512xf32>,
    %92 = vector.extract_strided_slice %1 {offsets = [0, 195], sizes = [8, 512], strides = [1, 1]} : vector<8x736xf32> to vector<8x512xf32>
    %c360 = arith.constant 360 : index
    %c0_48 = arith.constant 0 : index
    %93 = vector.load %arg6[%c360, %c0_48] : memref<392x512xf32, #tpu.memory_space<vmem>>, vector<8x512xf32>
    tpu.vector_store %arg6[%c360, %c0_48], %92 {strides = array<i32>} : memref<392x512xf32, #tpu.memory_space<vmem>>, vector<8x512xf32>,
    %94 = vector.extract_strided_slice %1 {offsets = [0, 196], sizes = [8, 512], strides = [1, 1]} : vector<8x736xf32> to vector<8x512xf32>
    %c368 = arith.constant 368 : index
    %c0_49 = arith.constant 0 : index
    %95 = vector.load %arg6[%c368, %c0_49] : memref<392x512xf32, #tpu.memory_space<vmem>>, vector<8x512xf32>
    tpu.vector_store %arg6[%c368, %c0_49], %94 {strides = array<i32>} : memref<392x512xf32, #tpu.memory_space<vmem>>, vector<8x512xf32>,
    %96 = vector.extract_strided_slice %1 {offsets = [0, 197], sizes = [8, 512], strides = [1, 1]} : vector<8x736xf32> to vector<8x512xf32>
    %c376 = arith.constant 376 : index
    %c0_50 = arith.constant 0 : index
    %97 = vector.load %arg6[%c376, %c0_50] : memref<392x512xf32, #tpu.memory_space<vmem>>, vector<8x512xf32>
    tpu.vector_store %arg6[%c376, %c0_50], %96 {strides = array<i32>} : memref<392x512xf32, #tpu.memory_space<vmem>>, vector<8x512xf32>,
    %98 = vector.extract_strided_slice %1 {offsets = [0, 198], sizes = [8, 512], strides = [1, 1]} : vector<8x736xf32> to vector<8x512xf32>
    %c384 = arith.constant 384 : index
    %c0_51 = arith.constant 0 : index
    %99 = vector.load %arg6[%c384, %c0_51] : memref<392x512xf32, #tpu.memory_space<vmem>>, vector<8x512xf32>
    tpu.vector_store %arg6[%c384, %c0_51], %98 {strides = array<i32>} : memref<392x512xf32, #tpu.memory_space<vmem>>, vector<8x512xf32>,
    %c0_52 = arith.constant 0 : index
    %c0_53 = arith.constant 0 : index
    %100 = vector.load %arg3[%c0_52, %c0_53] : memref<8x392xf32, #tpu.memory_space<vmem>>, vector<8x392xf32>
    %c0_54 = arith.constant 0 : index
    %c0_55 = arith.constant 0 : index
    %101 = vector.load %arg6[%c0_54, %c0_55] : memref<392x512xf32, #tpu.memory_space<vmem>>, vector<392x512xf32>
    %cst = arith.constant dense<0.000000e+00> : vector<8x512xf32>
    %102 = tpu.matmul %100, %101, %cst {dimension_numbers = #tpu.dot_dimension_numbers<[1], [0], [0], [1], [0, 0, 1, 1], [], []>} : vector<8x392xf32>, vector<392x512xf32>, vector<8x512xf32> -> vector<8x512xf32>
    %c0_56 = arith.constant 0 : index
    %c0_57 = arith.constant 0 : index
    %103 = vector.load %arg4[%c0_56, %c0_57] : memref<8x1xf32, #tpu.memory_space<vmem>>, vector<8x1xf32>
    %104 = vector.broadcast %103 : vector<8x1xf32> to vector<8x512xf32>
    %105 = arith.addf %102, %104 : vector<8x512xf32>
    %c0_58 = arith.constant 0 : index
    %c0_59 = arith.constant 0 : index
    %c0_60 = arith.constant 0 : index
    %106 = vector.load %arg5[%c0_58, %c0_59, %c0_60] : memref<1x8x512xf32, #tpu.memory_space<vmem>>, vector<1x8x512xf32>
    %107 = vector.shape_cast %106 : vector<1x8x512xf32> to vector<8x512xf32>
    %108 = vector.shape_cast %105 : vector<8x512xf32> to vector<1x8x512xf32>
    tpu.vector_store %arg5[%c0_58, %c0_59, %c0_60], %108 {strides = array<i32>} : memref<1x8x512xf32, #tpu.memory_space<vmem>>, vector<1x8x512xf32>,
    return
  }
  func.func @transform_0(%arg0: i32, %arg1: i32) -> (i32, i32, i32) {
    %c0_i32 = arith.constant 0 : i32
    %c0_i32_0 = arith.constant 0 : i32
    %c0_i32_1 = arith.constant 0 : i32
    return %arg0, %c0_i32, %c0_i32_0 : i32, i32, i32
  }
  func.func @transform_1(%arg0: i32, %arg1: i32) -> (i32, i32) {
    %c0_i32 = arith.constant 0 : i32
    %c0_i32_0 = arith.constant 0 : i32
    %c0_i32_1 = arith.constant 0 : i32
    return %c0_i32, %c0_i32_0 : i32, i32
  }
  func.func @transform_2(%arg0: i32, %arg1: i32) -> (i32, i32) {
    %c0_i32 = arith.constant 0 : i32
    %c0_i32_0 = arith.constant 0 : i32
    %c0_i32_1 = arith.constant 0 : i32
    return %c0_i32, %c0_i32_0 : i32, i32
  }
  func.func @transform_3(%arg0: i32, %arg1: i32) -> (i32, i32, i32) {
    %c0_i32 = arith.constant 0 : i32
    %c0_i32_0 = arith.constant 0 : i32
    return %arg0, %c0_i32, %arg1 : i32, i32, i32
  }
}

</mosaic_0001>

<llo_original>
// kernel: tpu_custom_call.1
$region0: #{tpu_custom_call.1}
  #allocation0 [shape = 'u32[]', space=smem, size = 0x4, offset = 0x4, fixed_abs, tag = 'smem constant byte address 0x4 - core index']
  #allocation1 [shape = 'u32[144,128]{1,0:T(1,128)}', space=vmem, size = 0x12000, scoped, tag = 'internal scratch']
  #allocation2 [shape = 'f32[392,512]{1,0:T(8,128)}', space=vmem, size = 0xc4000, scoped, tag = 'scratch operand']
  %s0 = inlined_call_operand.hbm [shape: f32[2,8,736], index: 0, kind: input, shape index: {}]
  %s1 = inlined_call_operand.hbm [shape: f32[8,392], index: 1, kind: input, shape index: {}]
  %s2 = inlined_call_operand.vmem [shape: f32[8,1], index: 2, kind: input, shape index: {}]
  %s3 = inlined_call_operand.hbm [shape: f32[2,8,512], index: 3, kind: output, shape index: {}]
  %s4 = sld [smem:[#allocation0]]
  $region53: #{tpu_custom_call.1} parent=0
    _
  %s6 = ssub.s32 1, %s4
  %s7 = scalar_select 0, %s6, %s4
  $region1: #{tpu_custom_call.1} parent=0
    #allocation3 [shape = 'u8[49152]{0}', space=vmem, size = 0xc000, scoped, tag = 'input window, operand 0']
    #allocation4 [shape = 's32[2]{0}', space=sflag, size = 0x8, scoped, tag = 'scoped memory for tpu_custom_call.1']
    #allocation5 [shape = 's32[2]{0}', space=sflag, size = 0x8, scoped, tag = 'scoped memory for tpu_custom_call.1']
    #allocation6 [shape = 'u8[16384]{0}', space=vmem, size = 0x4000, scoped, tag = 'input window, operand 1, single buffered']
    #allocation7 [shape = 's32[1]{0}', space=sflag, size = 0x4, scoped, tag = 'scoped memory for tpu_custom_call.1']
    #allocation8 [shape = 'u8[32768]{0}', space=vmem, size = 0x8000, scoped, tag = 'output window, operand 0']
    %8 = vsyncpa [#allocation4], 0
    %s9 = scalar_lea.sflag [#allocation4], 1
    %10 = vsyncpa %s9, 0
    %11 = vsyncpa [#allocation7], 0
    %12 = vsyncpa [#allocation5], 0
    %s13 = scalar_lea.sflag [#allocation5], 1
    %14 = vsyncpa %s13, 0
    loop: start=0, step=1, limit=4
    $region2: #{tpu_custom_call.1} parent=1 // loop_pre_header
      _
    $region3: #{tpu_custom_call.1} parent=1 // loop_header
      %s16 = sphi 0, %s20
      %p17 = scmp.ge.s32.totalorder %s16, 4
      %s23 = sphi 0, %s35
      %s24 = sphi 0, %s31
      %s25 = sphi 0, %s23
      %s26 = sphi 0, %s24
      %s27 = sphi 0, %s25
      %s28 = sphi 0, %s26
      %s38 = sphi 0, %s40
      %s41 = sphi 0, %s38
      %s42 = sphi 0, %s41
      %s58 = sphi 0, %s42
      %s62 = sphi 0, %s62
      %s64 = sphi 0, %s62
      %s65 = sphi 0, %s64
      %s79 = sphi 0, %s65
      %s83 = sphi 0, %s83
      %s85 = sphi 0, %s83
      %s86 = sphi 0, %s85
      %s100 = sphi 0, %s86
      %s108 = sphi 0, %s110
      %s111 = sphi 0, %s108
      %s112 = sphi 0, %s111
      %s128 = sphi 0, %s112
    $region4: #{tpu_custom_call.1} parent=1 // loop_header_branch
      %19 = sbr.rel (%p17) target = $region8
    $region5: #{tpu_custom_call.1} parent=1 // loop_body
      %s21 = ssub.s32 %s16, 1
      %s22 = ssub.s32 %s16, 2
      %s29 = sadd.s32 1, %s24
      %p30 = scmp.ge.s32.totalorder %s29, 1
      %s31 = scalar_select %p30, 0, %s29
      %s32 = sadd.s32 1, %s23
      %s33 = scalar_select %p30, %s32, %s23
      %p34 = scmp.ge.s32.totalorder %s33, 2
      %s35 = scalar_select %p34, 0, %s33
      %s36 = ssub.s32 %s23, %s35
      %p37 = scmp.eq.s32.totalorder %s36, 0
      %s39 = sadd.s32 %s38, 1
      %s40 = scalar_select %p37, %s38, %s39
      %p43 = pneg %p37
      %p44 = scmp.eq.s32.totalorder %s16, 1
      %p45 = por %p43, %p44
      %p46 = scmp.ne.s32.totalorder %s38, %s41
      %p47 = scmp.eq.s32.totalorder %s16, 0
      %p48 = por %p46, %p47
      %p49 = scmp.ne.s32.totalorder %s38, %s41
      %p50 = scmp.eq.s32.totalorder %s21, 1
      %p51 = por %p49, %p50
      %p52 = scmp.ne.s32.totalorder %s41, %s42
      %p53 = scmp.eq.s32.totalorder %s21, 0
      %p54 = por %p52, %p53
      %p55 = scmp.ne.s32.totalorder %s41, %s42
      %p56 = scmp.eq.s32.totalorder %s22, 1
      %p57 = por %p55, %p56
      %p59 = scmp.ne.s32.totalorder %s42, %s58
      %p60 = scmp.eq.s32.totalorder %s22, 0
      %p61 = por %p59, %p60
      %s63 = sadd.s32 %s62, 1
      %p66 = scmp.eq.s32.totalorder %s16, 1
      %p67 = scmp.ne.s32.totalorder %s62, %s64
      %p68 = scmp.eq.s32.totalorder %s16, 0
      %p69 = por %p67, %p68
      %p70 = scmp.ne.s32.totalorder %s62, %s64
      %p71 = scmp.eq.s32.totalorder %s21, 1
      %p72 = por %p70, %p71
      %p73 = scmp.ne.s32.totalorder %s64, %s65
      %p74 = scmp.eq.s32.totalorder %s21, 0
      %p75 = por %p73, %p74
      %p76 = scmp.ne.s32.totalorder %s64, %s65
      %p77 = scmp.eq.s32.totalorder %s22, 1
      %p78 = por %p76, %p77
      %p80 = scmp.ne.s32.totalorder %s65, %s79
      %p81 = scmp.eq.s32.totalorder %s22, 0
      %p82 = por %p80, %p81
      %s84 = sadd.s32 %s83, 1
      %p87 = scmp.eq.s32.totalorder %s16, 1
      %p88 = scmp.ne.s32.totalorder %s83, %s85
      %p89 = scmp.eq.s32.totalorder %s16, 0
      %p90 = por %p88, %p89
      %p91 = scmp.ne.s32.totalorder %s83, %s85
      %p92 = scmp.eq.s32.totalorder %s21, 1
      %p93 = por %p91, %p92
      %p94 = scmp.ne.s32.totalorder %s85, %s86
      %p95 = scmp.eq.s32.totalorder %s21, 0
      %p96 = por %p94, %p95
      %p97 = scmp.ne.s32.totalorder %s85, %s86
      %p98 = scmp.eq.s32.totalorder %s22, 1
      %p99 = por %p97, %p98
      %p101 = scmp.ne.s32.totalorder %s86, %s100
      %p102 = scmp.eq.s32.totalorder %s22, 0
      %p103 = por %p101, %p102
      %s104 = ssub.s32 %s23, %s35
      %s105 = ssub.s32 %s24, %s31
      %s106 = sor.u32 %s104, %s105
      %p107 = scmp.eq.s32.totalorder %s106, 0
      %s109 = sadd.s32 %s108, 1
      %s110 = scalar_select %p107, %s108, %s109
      %p113 = pneg %p107
      %p114 = scmp.eq.s32.totalorder %s16, 1
      %p115 = por %p113, %p114
      %p116 = scmp.ne.s32.totalorder %s108, %s111
      %p117 = scmp.eq.s32.totalorder %s16, 0
      %p118 = por %p116, %p117
      %p119 = scmp.ne.s32.totalorder %s108, %s111
      %p120 = scmp.eq.s32.totalorder %s21, 1
      %p121 = por %p119, %p120
      %p122 = scmp.ne.s32.totalorder %s111, %s112
      %p123 = scmp.eq.s32.totalorder %s21, 0
      %p124 = por %p122, %p123
      %p125 = scmp.ne.s32.totalorder %s111, %s112
      %p126 = scmp.eq.s32.totalorder %s22, 1
      %p127 = por %p125, %p126
      %p129 = scmp.ne.s32.totalorder %s112, %s128
      %p130 = scmp.eq.s32.totalorder %s22, 0
      %p131 = por %p129, %p130
      %p132 = scmp.le.s32.totalorder 1, %s16
      %p133 = scmp.lt.s32.totalorder %s16, 3
      %p134 = pnand %p132, %p133
      %p135 = pneg %p134
      // Predicated region
      $region9: #{tpu_custom_call.1} parent=5 // pred_check
        _
      $region10: #{tpu_custom_call.1} parent=5 // pred_check_branch
        %137 = sbr.rel (%p134) target = $region12
      $region11: #{tpu_custom_call.1} parent=5 // pred_region
        %s138 = ssub.s32 %s16, 1
        // Predicated region
        $region13: #{tpu_custom_call.1} parent=11 // pred_check
          %p139 = pneg %p75
        $region14: #{tpu_custom_call.1} parent=11 // pred_check_branch
          %141 = sbr.rel (%p139) target = $region16
        $region15: #{tpu_custom_call.1} parent=11 // pred_region
          %s143 = ssub.s32 512, 512
          %144 = vsyncadd [#allocation7], %s143
          %s146 = sshll.u32 [#allocation6], 4
          %s147 = int_to_ptr.vmem [resolvable:$true] %s146
          %149 = dma.hbm_to_vmem [thread:$0]  %s1, 512, %s147, [#allocation7]
        $region16: #{tpu_custom_call.1} parent=11 // pred_fallthru
          _
        // Predicated region
        $region17: #{tpu_custom_call.1} parent=11 // pred_check
          %p150 = pneg %p96
        $region18: #{tpu_custom_call.1} parent=11 // pred_check_branch
          %152 = sbr.rel (%p150) target = $region20
        $region19: #{tpu_custom_call.1} parent=11 // pred_region
          _
        $region20: #{tpu_custom_call.1} parent=11 // pred_fallthru
          _
      $region12: #{tpu_custom_call.1} parent=5 // pred_fallthru
        _
      %p153 = scmp.lt.s32.totalorder %s16, 2
      // Predicated region
      $region21: #{tpu_custom_call.1} parent=5 // pred_check
        %p154 = pneg %p153
      $region22: #{tpu_custom_call.1} parent=5 // pred_check_branch
        %156 = sbr.rel (%p154) target = $region24
      $region23: #{tpu_custom_call.1} parent=5 // pred_region
        // Predicated region
        $region25: #{tpu_custom_call.1} parent=23 // pred_check
          %p157 = pneg %p48
        $region26: #{tpu_custom_call.1} parent=23 // pred_check_branch
          %159 = sbr.rel (%p157) target = $region28
        $region27: #{tpu_custom_call.1} parent=23 // pred_region
          %s160 = sand.u32 %s38, 1
          %s161 = scalar_lea.sflag [#allocation4], %s160
          %s162 = sand.u32 %s38, 1
          %s163 = smul.addr %s162, 48
          %s164 = scalar_lea.vmem [#allocation3], %s163
          %s166 = ssub.s32 768, 768
          %167 = vsyncadd %s161, %s166
          %s168 = smul.addr %s23, 6
          %s169 = smul.addr %s168, 128
          %s170 = scalar_lea.hbm %s0, %s169
          %s172 = sshll.u32 %s164, 4
          %s173 = int_to_ptr.vmem [resolvable:$true] %s172
          %175 = dma.hbm_to_vmem [thread:$0]  %s170, 768, %s173, %s161
        $region28: #{tpu_custom_call.1} parent=23 // pred_fallthru
          _
      $region24: #{tpu_custom_call.1} parent=5 // pred_fallthru
        _
      %p176 = scmp.le.s32.totalorder 1, %s16
      %p177 = scmp.lt.s32.totalorder %s16, 3
      %p178 = pnand %p176, %p177
      %p179 = pneg %p178
      // Predicated region
      $region29: #{tpu_custom_call.1} parent=5 // pred_check
        _
      $region30: #{tpu_custom_call.1} parent=5 // pred_check_branch
        %181 = sbr.rel (%p178) target = $region32
      $region31: #{tpu_custom_call.1} parent=5 // pred_region
        %s182 = ssub.s32 %s16, 1
        %s183 = sand.u32 %s41, 1
        %s184 = scalar_lea.sflag [#allocation4], %s183
        %s185 = sand.u32 %s41, 1
        %s186 = smul.addr %s185, 48
        %s187 = scalar_lea.vmem [#allocation3], %s186
        // Predicated region
        $region33: #{tpu_custom_call.1} parent=31 // pred_check
          %p188 = pneg %p54
        $region34: #{tpu_custom_call.1} parent=31 // pred_check_branch
          %190 = sbr.rel (%p188) target = $region36
        $region35: #{tpu_custom_call.1} parent=31 // pred_region
          %191 = dma.done %s184, 768
        $region36: #{tpu_custom_call.1} parent=31 // pred_fallthru
          _
        // Predicated region
        $region37: #{tpu_custom_call.1} parent=31 // pred_check
          %p192 = pneg %p75
        $region38: #{tpu_custom_call.1} parent=31 // pred_check_branch
          %194 = sbr.rel (%p192) target = $region40
        $region39: #{tpu_custom_call.1} parent=31 // pred_region
          %195 = dma.done [#allocation7], 512
        $region40: #{tpu_custom_call.1} parent=31 // pred_fallthru
          _
        %s196 = sand.u32 %s41, 1
        %s197 = scalar_lea.sflag [#allocation4], %s196
        %s198 = sand.u32 %s41, 1
        %s199 = smul.addr %s198, 48
        %s200 = scalar_lea.vmem [#allocation3], %s199
        %p201 = pneg %p54
        %p202 = pneg %p51
        %p203 = pneg %p75
        %p204 = pneg %p72
        %p205 = pneg %p96
        %p206 = pneg %p93
        %p207 = pneg %p124
        %p208 = pneg %p121
        %s209 = sand.u32 %s111, 1
        %s210 = scalar_lea.sflag [#allocation5], %s209
        %s211 = sand.u32 %s111, 1
        %s212 = smul.addr %s211, 32
        %s213 = scalar_lea.vmem [#allocation8], %s212
        %s214 = smul.u32 4, %s26
        %v215 = vld [vmem:[%s187] sm:$0xff]
        %v216 = vld [vmem:[%s187 + $0x8] sm:$0xff]
        %v217 = vld [vmem:[%s187 + $0x10] sm:$0xff]
        %v218 = vld [vmem:[%s187 + $0x18] sm:$0xff]
        %v219 = vld [vmem:[%s187 + $0x20] sm:$0xff]
        %v220 = vld [vmem:[%s187 + $0x28] sm:$0xff]
        %221 = vst [vmem:[#allocation2] sm:$0xff] %v215
        %222 = vst [vmem:[#allocation2 + $0x8] sm:$0xff] %v216
        %223 = vst [vmem:[#allocation2 + $0x10] sm:$0xff] %v217
        %224 = vst [vmem:[#allocation2 + $0x18] sm:$0xff] %v218
        %230 = vrot.lane.b32.xlu0 %v215, 127
        %v231 = vpop.permute.xlu0 %230
        %232 = vrot.lane.b32.xlu0 %v216, 127
        %v233 = vpop.permute.xlu0 %232
        %234 = vrot.lane.b32.xlu0 %v217, 127
        %v235 = vpop.permute.xlu0 %234
        %236 = vrot.lane.b32.xlu0 %v218, 127
        %v237 = vpop.permute.xlu0 %236
        %238 = vrot.lane.b32.xlu0 %v219, 127
        %v239 = vpop.permute.xlu0 %238
        %vm240 = vcmask 1039360
        %v241 = vsel %vm240, %v231, %v233
        %v242 = vsel %vm240, %v233, %v235
        %v243 = vsel %vm240, %v235, %v237
        %v244 = vsel %vm240, %v237, %v239
        %249 = vst [vmem:[#allocation2 + $0x20] sm:$0xff] %v241
        %250 = vst [vmem:[#allocation2 + $0x28] sm:$0xff] %v242
        %251 = vst [vmem:[#allocation2 + $0x30] sm:$0xff] %v243
        %252 = vst [vmem:[#allocation2 + $0x38] sm:$0xff] %v244
        %253 = vrot.lane.b32.xlu0 %v215, 126
        %v254 = vpop.permute.xlu0 %253
        %255 = vrot.lane.b32.xlu0 %v216, 126
        %v256 = vpop.permute.xlu0 %255
        %257 = vrot.lane.b32.xlu0 %v217, 126
        %v258 = vpop.permute.xlu0 %257
        %259 = vrot.lane.b32.xlu0 %v218, 126
        %v260 = vpop.permute.xlu0 %259
        %261 = vrot.lane.b32.xlu0 %v219, 126
        %v262 = vpop.permute.xlu0 %261
        %vm263 = vcmask 1031168
        %v264 = vsel %vm263, %v254, %v256
        %v265 = vsel %vm263, %v256, %v258
        %v266 = vsel %vm263, %v258, %v260
        %v267 = vsel %vm263, %v260, %v262
        %272 = vst [vmem:[#allocation2 + $0x40] sm:$0xff] %v264
        %273 = vst [vmem:[#allocation2 + $0x48] sm:$0xff] %v265
        %274 = vst [vmem:[#allocation2 + $0x50] sm:$0xff] %v266
        %275 = vst [vmem:[#allocation2 + $0x58] sm:$0xff] %v267
        %276 = vrot.lane.b32.xlu0 %v215, 125
        %v277 = vpop.permute.xlu0 %276
        %278 = vrot.lane.b32.xlu0 %v216, 125
        %v279 = vpop.permute.xlu0 %278
        %280 = vrot.lane.b32.xlu0 %v217, 125
        %v281 = vpop.permute.xlu0 %280
        %282 = vrot.lane.b32.xlu0 %v218, 125
        %v283 = vpop.permute.xlu0 %282
        %284 = vrot.lane.b32.xlu0 %v219, 125
        %v285 = vpop.permute.xlu0 %284
        %vm286 = vcmask 1022976
        %v287 = vsel %vm286, %v277, %v279
        %v288 = vsel %vm286, %v279, %v281
        %v289 = vsel %vm286, %v281, %v283
        %v290 = vsel %vm286, %v283, %v285
        %295 = vst [vmem:[#allocation2 + $0x60] sm:$0xff] %v287
        %296 = vst [vmem:[#allocation2 + $0x68] sm:$0xff] %v288
        %297 = vst [vmem:[#allocation2 + $0x70] sm:$0xff] %v289
        %298 = vst [vmem:[#allocation2 + $0x78] sm:$0xff] %v290
        %299 = vrot.lane.b32.xlu0 %v215, 124
        %v300 = vpop.permute.xlu0 %299
        %301 = vrot.lane.b32.xlu0 %v216, 124
        %v302 = vpop.permute.xlu0 %301
        %303 = vrot.lane.b32.xlu0 %v217, 124
        %v304 = vpop.permute.xlu0 %303
        %305 = vrot.lane.b32.xlu0 %v218, 124
        %v306 = vpop.permute.xlu0 %305
        %307 = vrot.lane.b32.xlu0 %v219, 124
        %v308 = vpop.permute.xlu0 %307
        %vm309 = vcmask 1014784
        %v310 = vsel %vm309, %v300, %v302
        %v311 = vsel %vm309, %v302, %v304
        %v312 = vsel %vm309, %v304, %v306
        %v313 = vsel %vm309, %v306, %v308
        %318 = vst [vmem:[#allocation2 + $0x80] sm:$0xff] %v310
        %319 = vst [vmem:[#allocation2 + $0x88] sm:$0xff] %v311
        %320 = vst [vmem:[#allocation2 + $0x90] sm:$0xff] %v312
        %321 = vst [vmem:[#allocation2 + $0x98] sm:$0xff] %v313
        %322 = vrot.lane.b32.xlu0 %v215, 123
        %v323 = vpop.permute.xlu0 %322
        %324 = vrot.lane.b32.xlu0 %v216, 123
        %v325 = vpop.permute.xlu0 %324
        %326 = vrot.lane.b32.xlu0 %v217, 123
        %v327 = vpop.permute.xlu0 %326
        %328 = vrot.lane.b32.xlu0 %v218, 123
        %v329 = vpop.permute.xlu0 %328
        %330 = vrot.lane.b32.xlu0 %v219, 123
        %v331 = vpop.permute.xlu0 %330
        %vm332 = vcmask 1006592
        %v333 = vsel %vm332, %v323, %v325
        %v334 = vsel %vm332, %v325, %v327
        %v335 = vsel %vm332, %v327, %v329
        %v336 = vsel %vm332, %v329, %v331
        %341 = vst [vmem:[#allocation2 + $0xa0] sm:$0xff] %v333
        %342 = vst [vmem:[#allocation2 + $0xa8] sm:$0xff] %v334
        %343 = vst [vmem:[#allocation2 + $0xb0] sm:$0xff] %v335
        %344 = vst [vmem:[#allocation2 + $0xb8] sm:$0xff] %v336
        %345 = vrot.lane.b32.xlu0 %v215, 122
        %v346 = vpop.permute.xlu0 %345
        %347 = vrot.lane.b32.xlu0 %v216, 122
        %v348 = vpop.permute.xlu0 %347
        %349 = vrot.lane.b32.xlu0 %v217, 122
        %v350 = vpop.permute.xlu0 %349
        %351 = vrot.lane.b32.xlu0 %v218, 122
        %v352 = vpop.permute.xlu0 %351
        %353 = vrot.lane.b32.xlu0 %v219, 122
        %v354 = vpop.permute.xlu0 %353
        %vm355 = vcmask 998400
        %v356 = vsel %vm355, %v346, %v348
        %v357 = vsel %vm355, %v348, %v350
        %v358 = vsel %vm355, %v350, %v352
        %v359 = vsel %vm355, %v352, %v354
        %364 = vst [vmem:[#allocation2 + $0xc0] sm:$0xff] %v356
        %365 = vst [vmem:[#allocation2 + $0xc8] sm:$0xff] %v357
        %366 = vst [vmem:[#allocation2 + $0xd0] sm:$0xff] %v358
        %367 = vst [vmem:[#allocation2 + $0xd8] sm:$0xff] %v359
        %368 = vrot.lane.b32.xlu0 %v215, 96
        %v369 = vpop.permute.xlu0 %368
        %370 = vrot.lane.b32.xlu0 %v216, 96
        %v371 = vpop.permute.xlu0 %370
        %372 = vrot.lane.b32.xlu0 %v217, 96
        %v373 = vpop.permute.xlu0 %372
        %374 = vrot.lane.b32.xlu0 %v218, 96
        %v375 = vpop.permute.xlu0 %374
        %376 = vrot.lane.b32.xlu0 %v219, 96
        %v377 = vpop.permute.xlu0 %376
        %vm378 = vcmask 785408
        %v379 = vsel %vm378, %v369, %v371
        %v380 = vsel %vm378, %v371, %v373
        %v381 = vsel %vm378, %v373, %v375
        %v382 = vsel %vm378, %v375, %v377
        %387 = vst [vmem:[#allocation2 + $0xe0] sm:$0xff] %v379
        %388 = vst [vmem:[#allocation2 + $0xe8] sm:$0xff] %v380
        %389 = vst [vmem:[#allocation2 + $0xf0] sm:$0xff] %v381
        %390 = vst [vmem:[#allocation2 + $0xf8] sm:$0xff] %v382
        %391 = vrot.lane.b32.xlu0 %v215, 95
        %v392 = vpop.permute.xlu0 %391
        %393 = vrot.lane.b32.xlu0 %v216, 95
        %v394 = vpop.permute.xlu0 %393
        %395 = vrot.lane.b32.xlu0 %v217, 95
        %v396 = vpop.permute.xlu0 %395
        %397 = vrot.lane.b32.xlu0 %v218, 95
        %v398 = vpop.permute.xlu0 %397
        %399 = vrot.lane.b32.xlu0 %v219, 95
        %v400 = vpop.permute.xlu0 %399
        %vm401 = vcmask 777216
        %v402 = vsel %vm401, %v392, %v394
        %v403 = vsel %vm401, %v394, %v396
        %v404 = vsel %vm401, %v396, %v398
        %v405 = vsel %vm401, %v398, %v400
        %410 = vst [vmem:[#allocation2 + $0x100] sm:$0xff] %v402
        %411 = vst [vmem:[#allocation2 + $0x108] sm:$0xff] %v403
        %412 = vst [vmem:[#allocation2 + $0x110] sm:$0xff] %v404
        %413 = vst [vmem:[#allocation2 + $0x118] sm:$0xff] %v405
        %414 = vrot.lane.b32.xlu0 %v215, 94
        %v415 = vpop.permute.xlu0 %414
        %416 = vrot.lane.b32.xlu0 %v216, 94
        %v417 = vpop.permute.xlu0 %416
        %418 = vrot.lane.b32.xlu0 %v217, 94
        %v419 = vpop.permute.xlu0 %418
        %420 = vrot.lane.b32.xlu0 %v218, 94
        %v421 = vpop.permute.xlu0 %420
        %422 = vrot.lane.b32.xlu0 %v219, 94
        %v423 = vpop.permute.xlu0 %422
        %vm424 = vcmask 769024
        %v425 = vsel %vm424, %v415, %v417
        %v426 = vsel %vm424, %v417, %v419
        %v427 = vsel %vm424, %v419, %v421
        %v428 = vsel %vm424, %v421, %v423
        %433 = vst [vmem:[#allocation2 + $0x120] sm:$0xff] %v425
        %434 = vst [vmem:[#allocation2 + $0x128] sm:$0xff] %v426
        %435 = vst [vmem:[#allocation2 + $0x130] sm:$0xff] %v427
        %436 = vst [vmem:[#allocation2 + $0x138] sm:$0xff] %v428
        %437 = vrot.lane.b32.xlu0 %v215, 93
        %v438 = vpop.permute.xlu0 %437
        %439 = vrot.lane.b32.xlu0 %v216, 93
        %v440 = vpop.permute.xlu0 %439
        %441 = vrot.lane.b32.xlu0 %v217, 93
        %v442 = vpop.permute.xlu0 %441
        %443 = vrot.lane.b32.xlu0 %v218, 93
        %v444 = vpop.permute.xlu0 %443
        %445 = vrot.lane.b32.xlu0 %v219, 93
        %v446 = vpop.permute.xlu0 %445
        %vm447 = vcmask 760832
        %v448 = vsel %vm447, %v438, %v440
        %v449 = vsel %vm447, %v440, %v442
        %v450 = vsel %vm447, %v442, %v444
        %v451 = vsel %vm447, %v444, %v446
        %456 = vst [vmem:[#allocation2 + $0x140] sm:$0xff] %v448
        %457 = vst [vmem:[#allocation2 + $0x148] sm:$0xff] %v449
        %458 = vst [vmem:[#allocation2 + $0x150] sm:$0xff] %v450
        %459 = vst [vmem:[#allocation2 + $0x158] sm:$0xff] %v451
        %460 = vrot.lane.b32.xlu0 %v215, 92
        %v461 = vpop.permute.xlu0 %460
        %462 = vrot.lane.b32.xlu0 %v216, 92
        %v463 = vpop.permute.xlu0 %462
        %464 = vrot.lane.b32.xlu0 %v217, 92
        %v465 = vpop.permute.xlu0 %464
        %466 = vrot.lane.b32.xlu0 %v218, 92
        %v467 = vpop.permute.xlu0 %466
        %468 = vrot.lane.b32.xlu0 %v219, 92
        %v469 = vpop.permute.xlu0 %468
        %vm470 = vcmask 752640
        %v471 = vsel %vm470, %v461, %v463
        %v472 = vsel %vm470, %v463, %v465
        %v473 = vsel %vm470, %v465, %v467
        %v474 = vsel %vm470, %v467, %v469
        %479 = vst [vmem:[#allocation2 + $0x160] sm:$0xff] %v471
        %480 = vst [vmem:[#allocation2 + $0x168] sm:$0xff] %v472
        %481 = vst [vmem:[#allocation2 + $0x170] sm:$0xff] %v473
        %482 = vst [vmem:[#allocation2 + $0x178] sm:$0xff] %v474
        %483 = vrot.lane.b32.xlu0 %v215, 91
        %v484 = vpop.permute.xlu0 %483
        %485 = vrot.lane.b32.xlu0 %v216, 91
        %v486 = vpop.permute.xlu0 %485
        %487 = vrot.lane.b32.xlu0 %v217, 91
        %v488 = vpop.permute.xlu0 %487
        %489 = vrot.lane.b32.xlu0 %v218, 91
        %v490 = vpop.permute.xlu0 %489
        %491 = vrot.lane.b32.xlu0 %v219, 91
        %v492 = vpop.permute.xlu0 %491
        %vm493 = vcmask 744448
        %v494 = vsel %vm493, %v484, %v486
        %v495 = vsel %vm493, %v486, %v488
        %v496 = vsel %vm493, %v488, %v490
        %v497 = vsel %vm493, %v490, %v492
        %502 = vst [vmem:[#allocation2 + $0x180] sm:$0xff] %v494
        %503 = vst [vmem:[#allocation2 + $0x188] sm:$0xff] %v495
        %504 = vst [vmem:[#allocation2 + $0x190] sm:$0xff] %v496
        %505 = vst [vmem:[#allocation2 + $0x198] sm:$0xff] %v497
        %506 = vrot.lane.b32.xlu0 %v215, 90
        %v507 = vpop.permute.xlu0 %506
        %508 = vrot.lane.b32.xlu0 %v216, 90
        %v509 = vpop.permute.xlu0 %508
        %510 = vrot.lane.b32.xlu0 %v217, 90
        %v511 = vpop.permute.xlu0 %510
        %512 = vrot.lane.b32.xlu0 %v218, 90
        %v513 = vpop.permute.xlu0 %512
        %514 = vrot.lane.b32.xlu0 %v219, 90
        %v515 = vpop.permute.xlu0 %514
        %vm516 = vcmask 736256
        %v517 = vsel %vm516, %v507, %v509
        %v518 = vsel %vm516, %v509, %v511
        %v519 = vsel %vm516, %v511, %v513
        %v520 = vsel %vm516, %v513, %v515
        %525 = vst [vmem:[#allocation2 + $0x1a0] sm:$0xff] %v517
        %526 = vst [vmem:[#allocation2 + $0x1a8] sm:$0xff] %v518
        %527 = vst [vmem:[#allocation2 + $0x1b0] sm:$0xff] %v519
        %528 = vst [vmem:[#allocation2 + $0x1b8] sm:$0xff] %v520
        %529 = vrot.lane.b32.xlu0 %v215, 64
        %v530 = vpop.permute.xlu0 %529
        %531 = vrot.lane.b32.xlu0 %v216, 64
        %v532 = vpop.permute.xlu0 %531
        %533 = vrot.lane.b32.xlu0 %v217, 64
        %v534 = vpop.permute.xlu0 %533
        %535 = vrot.lane.b32.xlu0 %v218, 64
        %v536 = vpop.permute.xlu0 %535
        %537 = vrot.lane.b32.xlu0 %v219, 64
        %v538 = vpop.permute.xlu0 %537
        %vm539 = vcmask 523264
        %v540 = vsel %vm539, %v530, %v532
        %v541 = vsel %vm539, %v532, %v534
        %v542 = vsel %vm539, %v534, %v536
        %v543 = vsel %vm539, %v536, %v538
        %548 = vst [vmem:[#allocation2 + $0x1c0] sm:$0xff] %v540
        %549 = vst [vmem:[#allocation2 + $0x1c8] sm:$0xff] %v541
        %550 = vst [vmem:[#allocation2 + $0x1d0] sm:$0xff] %v542
        %551 = vst [vmem:[#allocation2 + $0x1d8] sm:$0xff] %v543
        %552 = vrot.lane.b32.xlu0 %v215, 63
        %v553 = vpop.permute.xlu0 %552
        %554 = vrot.lane.b32.xlu0 %v216, 63
        %v555 = vpop.permute.xlu0 %554
        %556 = vrot.lane.b32.xlu0 %v217, 63
        %v557 = vpop.permute.xlu0 %556
        %558 = vrot.lane.b32.xlu0 %v218, 63
        %v559 = vpop.permute.xlu0 %558
        %560 = vrot.lane.b32.xlu0 %v219, 63
        %v561 = vpop.permute.xlu0 %560
        %vm562 = vcmask 515072
        %v563 = vsel %vm562, %v553, %v555
        %v564 = vsel %vm562, %v555, %v557
        %v565 = vsel %vm562, %v557, %v559
        %v566 = vsel %vm562, %v559, %v561
        %571 = vst [vmem:[#allocation2 + $0x1e0] sm:$0xff] %v563
        %572 = vst [vmem:[#allocation2 + $0x1e8] sm:$0xff] %v564
        %573 = vst [vmem:[#allocation2 + $0x1f0] sm:$0xff] %v565
        %574 = vst [vmem:[#allocation2 + $0x1f8] sm:$0xff] %v566
        %575 = vrot.lane.b32.xlu0 %v215, 62
        %v576 = vpop.permute.xlu0 %575
        %577 = vrot.lane.b32.xlu0 %v216, 62
        %v578 = vpop.permute.xlu0 %577
        %579 = vrot.lane.b32.xlu0 %v217, 62
        %v580 = vpop.permute.xlu0 %579
        %581 = vrot.lane.b32.xlu0 %v218, 62
        %v582 = vpop.permute.xlu0 %581
        %583 = vrot.lane.b32.xlu0 %v219, 62
        %v584 = vpop.permute.xlu0 %583
        %vm585 = vcmask 506880
        %v586 = vsel %vm585, %v576, %v578
        %v587 = vsel %vm585, %v578, %v580
        %v588 = vsel %vm585, %v580, %v582
        %v589 = vsel %vm585, %v582, %v584
        %594 = vst [vmem:[#allocation2 + $0x200] sm:$0xff] %v586
        %595 = vst [vmem:[#allocation2 + $0x208] sm:$0xff] %v587
        %596 = vst [vmem:[#allocation2 + $0x210] sm:$0xff] %v588
        %597 = vst [vmem:[#allocation2 + $0x218] sm:$0xff] %v589
        %598 = vrot.lane.b32.xlu0 %v215, 61
        %v599 = vpop.permute.xlu0 %598
        %600 = vrot.lane.b32.xlu0 %v216, 61
        %v601 = vpop.permute.xlu0 %600
        %602 = vrot.lane.b32.xlu0 %v217, 61
        %v603 = vpop.permute.xlu0 %602
        %604 = vrot.lane.b32.xlu0 %v218, 61
        %v605 = vpop.permute.xlu0 %604
        %606 = vrot.lane.b32.xlu0 %v219, 61
        %v607 = vpop.permute.xlu0 %606
        %vm608 = vcmask 498688
        %v609 = vsel %vm608, %v599, %v601
        %v610 = vsel %vm608, %v601, %v603
        %v611 = vsel %vm608, %v603, %v605
        %v612 = vsel %vm608, %v605, %v607
        %617 = vst [vmem:[#allocation2 + $0x220] sm:$0xff] %v609
        %618 = vst [vmem:[#allocation2 + $0x228] sm:$0xff] %v610
        %619 = vst [vmem:[#allocation2 + $0x230] sm:$0xff] %v611
        %620 = vst [vmem:[#allocation2 + $0x238] sm:$0xff] %v612
        %621 = vrot.lane.b32.xlu0 %v215, 60
        %v622 = vpop.permute.xlu0 %621
        %623 = vrot.lane.b32.xlu0 %v216, 60
        %v624 = vpop.permute.xlu0 %623
        %625 = vrot.lane.b32.xlu0 %v217, 60
        %v626 = vpop.permute.xlu0 %625
        %627 = vrot.lane.b32.xlu0 %v218, 60
        %v628 = vpop.permute.xlu0 %627
        %629 = vrot.lane.b32.xlu0 %v219, 60
        %v630 = vpop.permute.xlu0 %629
        %vm631 = vcmask 490496
        %v632 = vsel %vm631, %v622, %v624
        %v633 = vsel %vm631, %v624, %v626
        %v634 = vsel %vm631, %v626, %v628
        %v635 = vsel %vm631, %v628, %v630
        %640 = vst [vmem:[#allocation2 + $0x240] sm:$0xff] %v632
        %641 = vst [vmem:[#allocation2 + $0x248] sm:$0xff] %v633
        %642 = vst [vmem:[#allocation2 + $0x250] sm:$0xff] %v634
        %643 = vst [vmem:[#allocation2 + $0x258] sm:$0xff] %v635
        %644 = vrot.lane.b32.xlu0 %v215, 59
        %v645 = vpop.permute.xlu0 %644
        %646 = vrot.lane.b32.xlu0 %v216, 59
        %v647 = vpop.permute.xlu0 %646
        %648 = vrot.lane.b32.xlu0 %v217, 59
        %v649 = vpop.permute.xlu0 %648
        %650 = vrot.lane.b32.xlu0 %v218, 59
        %v651 = vpop.permute.xlu0 %650
        %652 = vrot.lane.b32.xlu0 %v219, 59
        %v653 = vpop.permute.xlu0 %652
        %vm654 = vcmask 482304
        %v655 = vsel %vm654, %v645, %v647
        %v656 = vsel %vm654, %v647, %v649
        %v657 = vsel %vm654, %v649, %v651
        %v658 = vsel %vm654, %v651, %v653
        %663 = vst [vmem:[#allocation2 + $0x260] sm:$0xff] %v655
        %664 = vst [vmem:[#allocation2 + $0x268] sm:$0xff] %v656
        %665 = vst [vmem:[#allocation2 + $0x270] sm:$0xff] %v657
        %666 = vst [vmem:[#allocation2 + $0x278] sm:$0xff] %v658
        %667 = vrot.lane.b32.xlu0 %v215, 58
        %v668 = vpop.permute.xlu0 %667
        %669 = vrot.lane.b32.xlu0 %v216, 58
        %v670 = vpop.permute.xlu0 %669
        %671 = vrot.lane.b32.xlu0 %v217, 58
        %v672 = vpop.permute.xlu0 %671
        %673 = vrot.lane.b32.xlu0 %v218, 58
        %v674 = vpop.permute.xlu0 %673
        %675 = vrot.lane.b32.xlu0 %v219, 58
        %v676 = vpop.permute.xlu0 %675
        %vm677 = vcmask 474112
        %v678 = vsel %vm677, %v668, %v670
        %v679 = vsel %vm677, %v670, %v672
        %v680 = vsel %vm677, %v672, %v674
        %v681 = vsel %vm677, %v674, %v676
        %686 = vst [vmem:[#allocation2 + $0x280] sm:$0xff] %v678
        %687 = vst [vmem:[#allocation2 + $0x288] sm:$0xff] %v679
        %688 = vst [vmem:[#allocation2 + $0x290] sm:$0xff] %v680
        %689 = vst [vmem:[#allocation2 + $0x298] sm:$0xff] %v681
        %690 = vrot.lane.b32.xlu0 %v215, 32
        %v691 = vpop.permute.xlu0 %690
        %692 = vrot.lane.b32.xlu0 %v216, 32
        %v693 = vpop.permute.xlu0 %692
        %694 = vrot.lane.b32.xlu0 %v217, 32
        %v695 = vpop.permute.xlu0 %694
        %696 = vrot.lane.b32.xlu0 %v218, 32
        %v697 = vpop.permute.xlu0 %696
        %698 = vrot.lane.b32.xlu0 %v219, 32
        %v699 = vpop.permute.xlu0 %698
        %vm700 = vcmask 261120
        %v701 = vsel %vm700, %v691, %v693
        %v702 = vsel %vm700, %v693, %v695
        %v703 = vsel %vm700, %v695, %v697
        %v704 = vsel %vm700, %v697, %v699
        %709 = vst [vmem:[#allocation2 + $0x2a0] sm:$0xff] %v701
        %710 = vst [vmem:[#allocation2 + $0x2a8] sm:$0xff] %v702
        %711 = vst [vmem:[#allocation2 + $0x2b0] sm:$0xff] %v703
        %712 = vst [vmem:[#allocation2 + $0x2b8] sm:$0xff] %v704
        %713 = vrot.lane.b32.xlu0 %v215, 31
        %v714 = vpop.permute.xlu0 %713
        %715 = vrot.lane.b32.xlu0 %v216, 31
        %v716 = vpop.permute.xlu0 %715
        %717 = vrot.lane.b32.xlu0 %v217, 31
        %v718 = vpop.permute.xlu0 %717
        %719 = vrot.lane.b32.xlu0 %v218, 31
        %v720 = vpop.permute.xlu0 %719
        %721 = vrot.lane.b32.xlu0 %v219, 31
        %v722 = vpop.permute.xlu0 %721
        %vm723 = vcmask 252928
        %v724 = vsel %vm723, %v714, %v716
        %v725 = vsel %vm723, %v716, %v718
        %v726 = vsel %vm723, %v718, %v720
        %v727 = vsel %vm723, %v720, %v722
        %732 = vst [vmem:[#allocation2 + $0x2c0] sm:$0xff] %v724
        %733 = vst [vmem:[#allocation2 + $0x2c8] sm:$0xff] %v725
        %734 = vst [vmem:[#allocation2 + $0x2d0] sm:$0xff] %v726
        %735 = vst [vmem:[#allocation2 + $0x2d8] sm:$0xff] %v727
        %736 = vrot.lane.b32.xlu0 %v215, 30
        %v737 = vpop.permute.xlu0 %736
        %738 = vrot.lane.b32.xlu0 %v216, 30
        %v739 = vpop.permute.xlu0 %738
        %740 = vrot.lane.b32.xlu0 %v217, 30
        %v741 = vpop.permute.xlu0 %740
        %742 = vrot.lane.b32.xlu0 %v218, 30
        %v743 = vpop.permute.xlu0 %742
        %744 = vrot.lane.b32.xlu0 %v219, 30
        %v745 = vpop.permute.xlu0 %744
        %vm746 = vcmask 244736
        %v747 = vsel %vm746, %v737, %v739
        %v748 = vsel %vm746, %v739, %v741
        %v749 = vsel %vm746, %v741, %v743
        %v750 = vsel %vm746, %v743, %v745
        %755 = vst [vmem:[#allocation2 + $0x2e0] sm:$0xff] %v747
        %756 = vst [vmem:[#allocation2 + $0x2e8] sm:$0xff] %v748
        %757 = vst [vmem:[#allocation2 + $0x2f0] sm:$0xff] %v749
        %758 = vst [vmem:[#allocation2 + $0x2f8] sm:$0xff] %v750
        %759 = vrot.lane.b32.xlu0 %v215, 29
        %v760 = vpop.permute.xlu0 %759
        %761 = vrot.lane.b32.xlu0 %v216, 29
        %v762 = vpop.permute.xlu0 %761
        %763 = vrot.lane.b32.xlu0 %v217, 29
        %v764 = vpop.permute.xlu0 %763
        %765 = vrot.lane.b32.xlu0 %v218, 29
        %v766 = vpop.permute.xlu0 %765
        %767 = vrot.lane.b32.xlu0 %v219, 29
        %v768 = vpop.permute.xlu0 %767
        %vm769 = vcmask 236544
        %v770 = vsel %vm769, %v760, %v762
        %v771 = vsel %vm769, %v762, %v764
        %v772 = vsel %vm769, %v764, %v766
        %v773 = vsel %vm769, %v766, %v768
        %778 = vst [vmem:[#allocation2 + $0x300] sm:$0xff] %v770
        %779 = vst [vmem:[#allocation2 + $0x308] sm:$0xff] %v771
        %780 = vst [vmem:[#allocation2 + $0x310] sm:$0xff] %v772
        %781 = vst [vmem:[#allocation2 + $0x318] sm:$0xff] %v773
        %782 = vrot.lane.b32.xlu0 %v215, 28
        %v783 = vpop.permute.xlu0 %782
        %784 = vrot.lane.b32.xlu0 %v216, 28
        %v785 = vpop.permute.xlu0 %784
        %786 = vrot.lane.b32.xlu0 %v217, 28
        %v787 = vpop.permute.xlu0 %786
        %788 = vrot.lane.b32.xlu0 %v218, 28
        %v789 = vpop.permute.xlu0 %788
        %790 = vrot.lane.b32.xlu0 %v219, 28
        %v791 = vpop.permute.xlu0 %790
        %vm792 = vcmask 228352
        %v793 = vsel %vm792, %v783, %v785
        %v794 = vsel %vm792, %v785, %v787
        %v795 = vsel %vm792, %v787, %v789
        %v796 = vsel %vm792, %v789, %v791
        %801 = vst [vmem:[#allocation2 + $0x320] sm:$0xff] %v793
        %802 = vst [vmem:[#allocation2 + $0x328] sm:$0xff] %v794
        %803 = vst [vmem:[#allocation2 + $0x330] sm:$0xff] %v795
        %804 = vst [vmem:[#allocation2 + $0x338] sm:$0xff] %v796
        %805 = vrot.lane.b32.xlu0 %v215, 27
        %v806 = vpop.permute.xlu0 %805
        %807 = vrot.lane.b32.xlu0 %v216, 27
        %v808 = vpop.permute.xlu0 %807
        %809 = vrot.lane.b32.xlu0 %v217, 27
        %v810 = vpop.permute.xlu0 %809
        %811 = vrot.lane.b32.xlu0 %v218, 27
        %v812 = vpop.permute.xlu0 %811
        %813 = vrot.lane.b32.xlu0 %v219, 27
        %v814 = vpop.permute.xlu0 %813
        %vm815 = vcmask 220160
        %v816 = vsel %vm815, %v806, %v808
        %v817 = vsel %vm815, %v808, %v810
        %v818 = vsel %vm815, %v810, %v812
        %v819 = vsel %vm815, %v812, %v814
        %824 = vst [vmem:[#allocation2 + $0x340] sm:$0xff] %v816
        %825 = vst [vmem:[#allocation2 + $0x348] sm:$0xff] %v817
        %826 = vst [vmem:[#allocation2 + $0x350] sm:$0xff] %v818
        %827 = vst [vmem:[#allocation2 + $0x358] sm:$0xff] %v819
        %828 = vrot.lane.b32.xlu0 %v215, 26
        %v829 = vpop.permute.xlu0 %828
        %830 = vrot.lane.b32.xlu0 %v216, 26
        %v831 = vpop.permute.xlu0 %830
        %832 = vrot.lane.b32.xlu0 %v217, 26
        %v833 = vpop.permute.xlu0 %832
        %834 = vrot.lane.b32.xlu0 %v218, 26
        %v835 = vpop.permute.xlu0 %834
        %836 = vrot.lane.b32.xlu0 %v219, 26
        %v837 = vpop.permute.xlu0 %836
        %vm838 = vcmask 211968
        %v839 = vsel %vm838, %v829, %v831
        %v840 = vsel %vm838, %v831, %v833
        %v841 = vsel %vm838, %v833, %v835
        %v842 = vsel %vm838, %v835, %v837
        %847 = vst [vmem:[#allocation2 + $0x360] sm:$0xff] %v839
        %848 = vst [vmem:[#allocation2 + $0x368] sm:$0xff] %v840
        %849 = vst [vmem:[#allocation2 + $0x370] sm:$0xff] %v841
        %850 = vst [vmem:[#allocation2 + $0x378] sm:$0xff] %v842
        %851 = vst [vmem:[#allocation2 + $0x380] sm:$0xff] %v216
        %852 = vst [vmem:[#allocation2 + $0x388] sm:$0xff] %v217
        %853 = vst [vmem:[#allocation2 + $0x390] sm:$0xff] %v218
        %854 = vst [vmem:[#allocation2 + $0x398] sm:$0xff] %v219
        %856 = vrot.lane.b32.xlu0 %v220, 127
        %v857 = vpop.permute.xlu0 %856
        %v858 = vsel %vm240, %v239, %v857
        %860 = vst [vmem:[#allocation2 + $0x3a0] sm:$0xff] %v242
        %861 = vst [vmem:[#allocation2 + $0x3a8] sm:$0xff] %v243
        %862 = vst [vmem:[#allocation2 + $0x3b0] sm:$0xff] %v244
        %863 = vst [vmem:[#allocation2 + $0x3b8] sm:$0xff] %v858
        %864 = vrot.lane.b32.xlu0 %v220, 126
        %v865 = vpop.permute.xlu0 %864
        %v866 = vsel %vm263, %v262, %v865
        %868 = vst [vmem:[#allocation2 + $0x3c0] sm:$0xff] %v265
        %869 = vst [vmem:[#allocation2 + $0x3c8] sm:$0xff] %v266
        %870 = vst [vmem:[#allocation2 + $0x3d0] sm:$0xff] %v267
        %871 = vst [vmem:[#allocation2 + $0x3d8] sm:$0xff] %v866
        %872 = vrot.lane.b32.xlu0 %v220, 125
        %v873 = vpop.permute.xlu0 %872
        %v874 = vsel %vm286, %v285, %v873
        %876 = vst [vmem:[#allocation2 + $0x3e0] sm:$0xff] %v288
        %877 = vst [vmem:[#allocation2 + $0x3e8] sm:$0xff] %v289
        %878 = vst [vmem:[#allocation2 + $0x3f0] sm:$0xff] %v290
        %879 = vst [vmem:[#allocation2 + $0x3f8] sm:$0xff] %v874
        %880 = vrot.lane.b32.xlu0 %v220, 124
        %v881 = vpop.permute.xlu0 %880
        %v882 = vsel %vm309, %v308, %v881
        %884 = vst [vmem:[#allocation2 + $0x400] sm:$0xff] %v311
        %885 = vst [vmem:[#allocation2 + $0x408] sm:$0xff] %v312
        %886 = vst [vmem:[#allocation2 + $0x410] sm:$0xff] %v313
        %887 = vst [vmem:[#allocation2 + $0x418] sm:$0xff] %v882
        %888 = vrot.lane.b32.xlu0 %v220, 123
        %v889 = vpop.permute.xlu0 %888
        %v890 = vsel %vm332, %v331, %v889
        %892 = vst [vmem:[#allocation2 + $0x420] sm:$0xff] %v334
        %893 = vst [vmem:[#allocation2 + $0x428] sm:$0xff] %v335
        %894 = vst [vmem:[#allocation2 + $0x430] sm:$0xff] %v336
        %895 = vst [vmem:[#allocation2 + $0x438] sm:$0xff] %v890
        %896 = vrot.lane.b32.xlu0 %v220, 122
        %v897 = vpop.permute.xlu0 %896
        %v898 = vsel %vm355, %v354, %v897
        %900 = vst [vmem:[#allocation2 + $0x440] sm:$0xff] %v357
        %901 = vst [vmem:[#allocation2 + $0x448] sm:$0xff] %v358
        %902 = vst [vmem:[#allocation2 + $0x450] sm:$0xff] %v359
        %903 = vst [vmem:[#allocation2 + $0x458] sm:$0xff] %v898
        %904 = vrot.lane.b32.xlu0 %v220, 96
        %v905 = vpop.permute.xlu0 %904
        %v906 = vsel %vm378, %v377, %v905
        %908 = vst [vmem:[#allocation2 + $0x460] sm:$0xff] %v380
        %909 = vst [vmem:[#allocation2 + $0x468] sm:$0xff] %v381
        %910 = vst [vmem:[#allocation2 + $0x470] sm:$0xff] %v382
        %911 = vst [vmem:[#allocation2 + $0x478] sm:$0xff] %v906
        %912 = vrot.lane.b32.xlu0 %v220, 95
        %v913 = vpop.permute.xlu0 %912
        %v914 = vsel %vm401, %v400, %v913
        %916 = vst [vmem:[#allocation2 + $0x480] sm:$0xff] %v403
        %917 = vst [vmem:[#allocation2 + $0x488] sm:$0xff] %v404
        %918 = vst [vmem:[#allocation2 + $0x490] sm:$0xff] %v405
        %919 = vst [vmem:[#allocation2 + $0x498] sm:$0xff] %v914
        %920 = vrot.lane.b32.xlu0 %v220, 94
        %v921 = vpop.permute.xlu0 %920
        %v922 = vsel %vm424, %v423, %v921
        %924 = vst [vmem:[#allocation2 + $0x4a0] sm:$0xff] %v426
        %925 = vst [vmem:[#allocation2 + $0x4a8] sm:$0xff] %v427
        %926 = vst [vmem:[#allocation2 + $0x4b0] sm:$0xff] %v428
        %927 = vst [vmem:[#allocation2 + $0x4b8] sm:$0xff] %v922
        %928 = vrot.lane.b32.xlu0 %v220, 93
        %v929 = vpop.permute.xlu0 %928
        %v930 = vsel %vm447, %v446, %v929
        %932 = vst [vmem:[#allocation2 + $0x4c0] sm:$0xff] %v449
        %933 = vst [vmem:[#allocation2 + $0x4c8] sm:$0xff] %v450
        %934 = vst [vmem:[#allocation2 + $0x4d0] sm:$0xff] %v451
        %935 = vst [vmem:[#allocation2 + $0x4d8] sm:$0xff] %v930
        %936 = vrot.lane.b32.xlu0 %v220, 92
        %v937 = vpop.permute.xlu0 %936
        %v938 = vsel %vm470, %v469, %v937
        %940 = vst [vmem:[#allocation2 + $0x4e0] sm:$0xff] %v472
        %941 = vst [vmem:[#allocation2 + $0x4e8] sm:$0xff] %v473
        %942 = vst [vmem:[#allocation2 + $0x4f0] sm:$0xff] %v474
        %943 = vst [vmem:[#allocation2 + $0x4f8] sm:$0xff] %v938
        %944 = vrot.lane.b32.xlu0 %v220, 91
        %v945 = vpop.permute.xlu0 %944
        %v946 = vsel %vm493, %v492, %v945
        %948 = vst [vmem:[#allocation2 + $0x500] sm:$0xff] %v495
        %949 = vst [vmem:[#allocation2 + $0x508] sm:$0xff] %v496
        %950 = vst [vmem:[#allocation2 + $0x510] sm:$0xff] %v497
        %951 = vst [vmem:[#allocation2 + $0x518] sm:$0xff] %v946
        %952 = vrot.lane.b32.xlu0 %v220, 90
        %v953 = vpop.permute.xlu0 %952
        %v954 = vsel %vm516, %v515, %v953
        %956 = vst [vmem:[#allocation2 + $0x520] sm:$0xff] %v518
        %957 = vst [vmem:[#allocation2 + $0x528] sm:$0xff] %v519
        %958 = vst [vmem:[#allocation2 + $0x530] sm:$0xff] %v520
        %959 = vst [vmem:[#allocation2 + $0x538] sm:$0xff] %v954
        %960 = vrot.lane.b32.xlu0 %v220, 64
        %v961 = vpop.permute.xlu0 %960
        %v962 = vsel %vm539, %v538, %v961
        %964 = vst [vmem:[#allocation2 + $0x540] sm:$0xff] %v541
        %965 = vst [vmem:[#allocation2 + $0x548] sm:$0xff] %v542
        %966 = vst [vmem:[#allocation2 + $0x550] sm:$0xff] %v543
        %967 = vst [vmem:[#allocation2 + $0x558] sm:$0xff] %v962
        %968 = vrot.lane.b32.xlu0 %v220, 63
        %v969 = vpop.permute.xlu0 %968
        %v970 = vsel %vm562, %v561, %v969
        %972 = vst [vmem:[#allocation2 + $0x560] sm:$0xff] %v564
        %973 = vst [vmem:[#allocation2 + $0x568] sm:$0xff] %v565
        %974 = vst [vmem:[#allocation2 + $0x570] sm:$0xff] %v566
        %975 = vst [vmem:[#allocation2 + $0x578] sm:$0xff] %v970
        %976 = vrot.lane.b32.xlu0 %v220, 62
        %v977 = vpop.permute.xlu0 %976
        %v978 = vsel %vm585, %v584, %v977
        %980 = vst [vmem:[#allocation2 + $0x580] sm:$0xff] %v587
        %981 = vst [vmem:[#allocation2 + $0x588] sm:$0xff] %v588
        %982 = vst [vmem:[#allocation2 + $0x590] sm:$0xff] %v589
        %983 = vst [vmem:[#allocation2 + $0x598] sm:$0xff] %v978
        %984 = vrot.lane.b32.xlu0 %v220, 61
        %v985 = vpop.permute.xlu0 %984
        %v986 = vsel %vm608, %v607, %v985
        %988 = vst [vmem:[#allocation2 + $0x5a0] sm:$0xff] %v610
        %989 = vst [vmem:[#allocation2 + $0x5a8] sm:$0xff] %v611
        %990 = vst [vmem:[#allocation2 + $0x5b0] sm:$0xff] %v612
        %991 = vst [vmem:[#allocation2 + $0x5b8] sm:$0xff] %v986
        %992 = vrot.lane.b32.xlu0 %v220, 60
        %v993 = vpop.permute.xlu0 %992
        %v994 = vsel %vm631, %v630, %v993
        %996 = vst [vmem:[#allocation2 + $0x5c0] sm:$0xff] %v633
        %997 = vst [vmem:[#allocation2 + $0x5c8] sm:$0xff] %v634
        %998 = vst [vmem:[#allocation2 + $0x5d0] sm:$0xff] %v635
        %999 = vst [vmem:[#allocation2 + $0x5d8] sm:$0xff] %v994
        %1000 = vrot.lane.b32.xlu0 %v220, 59
        %v1001 = vpop.permute.xlu0 %1000
        %v1002 = vsel %vm654, %v653, %v1001
        %1004 = vst [vmem:[#allocation2 + $0x5e0] sm:$0xff] %v656
        %1005 = vst [vmem:[#allocation2 + $0x5e8] sm:$0xff] %v657
        %1006 = vst [vmem:[#allocation2 + $0x5f0] sm:$0xff] %v658
        %1007 = vst [vmem:[#allocation2 + $0x5f8] sm:$0xff] %v1002
        %1008 = vrot.lane.b32.xlu0 %v220, 58
        %v1009 = vpop.permute.xlu0 %1008
        %v1010 = vsel %vm677, %v676, %v1009
        %1012 = vst [vmem:[#allocation2 + $0x600] sm:$0xff] %v679
        %1013 = vst [vmem:[#allocation2 + $0x608] sm:$0xff] %v680
        %1014 = vst [vmem:[#allocation2 + $0x610] sm:$0xff] %v681
        %1015 = vst [vmem:[#allocation2 + $0x618] sm:$0xff] %v1010
        %v1016 = vld [vmem:[#allocation6] sm:$0xff]
        %v1017 = vld [vmem:[#allocation6 + $0x8] sm:$0xff]
        %v1018 = vld [vmem:[#allocation6 + $0x10] sm:$0xff]
        %v1019 = vld [vmem:[#allocation6 + $0x18] sm:$0xff]
        %v1020 = vld [vmem:[#allocation2] sm:$0xff]
        %v1021 = vld [vmem:[#allocation2 + $0x8] sm:$0xff]
        %v1022 = vld [vmem:[#allocation2 + $0x10] sm:$0xff]
        %v1023 = vld [vmem:[#allocation2 + $0x18] sm:$0xff]
        %v1024 = vld [vmem:[#allocation2 + $0x20] sm:$0xff]
        %v1025 = vld [vmem:[#allocation2 + $0x28] sm:$0xff]
        %v1026 = vld [vmem:[#allocation2 + $0x30] sm:$0xff]
        %v1027 = vld [vmem:[#allocation2 + $0x38] sm:$0xff]
        %v1028 = vld [vmem:[#allocation2 + $0x40] sm:$0xff]
        %v1029 = vld [vmem:[#allocation2 + $0x48] sm:$0xff]
        %v1030 = vld [vmem:[#allocation2 + $0x50] sm:$0xff]
        %v1031 = vld [vmem:[#allocation2 + $0x58] sm:$0xff]
        %v1032 = vld [vmem:[#allocation2 + $0x60] sm:$0xff]
        %v1033 = vld [vmem:[#allocation2 + $0x68] sm:$0xff]
        %v1034 = vld [vmem:[#allocation2 + $0x70] sm:$0xff]
        %v1035 = vld [vmem:[#allocation2 + $0x78] sm:$0xff]
        %v1036 = vld [vmem:[#allocation2 + $0x80] sm:$0xff]
        %v1037 = vld [vmem:[#allocation2 + $0x88] sm:$0xff]
        %v1038 = vld [vmem:[#allocation2 + $0x90] sm:$0xff]
        %v1039 = vld [vmem:[#allocation2 + $0x98] sm:$0xff]
        %v1040 = vld [vmem:[#allocation2 + $0xa0] sm:$0xff]
        %v1041 = vld [vmem:[#allocation2 + $0xa8] sm:$0xff]
        %v1042 = vld [vmem:[#allocation2 + $0xb0] sm:$0xff]
        %v1043 = vld [vmem:[#allocation2 + $0xb8] sm:$0xff]
        %v1044 = vld [vmem:[#allocation2 + $0xc0] sm:$0xff]
        %v1045 = vld [vmem:[#allocation2 + $0xc8] sm:$0xff]
        %v1046 = vld [vmem:[#allocation2 + $0xd0] sm:$0xff]
        %v1047 = vld [vmem:[#allocation2 + $0xd8] sm:$0xff]
        %v1048 = vld [vmem:[#allocation2 + $0xe0] sm:$0xff]
        %v1049 = vld [vmem:[#allocation2 + $0xe8] sm:$0xff]
        %v1050 = vld [vmem:[#allocation2 + $0xf0] sm:$0xff]
        %v1051 = vld [vmem:[#allocation2 + $0xf8] sm:$0xff]
        %v1052 = vld [vmem:[#allocation2 + $0x100] sm:$0xff]
        %v1053 = vld [vmem:[#allocation2 + $0x108] sm:$0xff]
        %v1054 = vld [vmem:[#allocation2 + $0x110] sm:$0xff]
        %v1055 = vld [vmem:[#allocation2 + $0x118] sm:$0xff]
        %v1056 = vld [vmem:[#allocation2 + $0x120] sm:$0xff]
        %v1057 = vld [vmem:[#allocation2 + $0x128] sm:$0xff]
        %v1058 = vld [vmem:[#allocation2 + $0x130] sm:$0xff]
        %v1059 = vld [vmem:[#allocation2 + $0x138] sm:$0xff]
        %v1060 = vld [vmem:[#allocation2 + $0x140] sm:$0xff]
        %v1061 = vld [vmem:[#allocation2 + $0x148] sm:$0xff]
        %v1062 = vld [vmem:[#allocation2 + $0x150] sm:$0xff]
        %v1063 = vld [vmem:[#allocation2 + $0x158] sm:$0xff]
        %v1064 = vld [vmem:[#allocation2 + $0x160] sm:$0xff]
        %v1065 = vld [vmem:[#allocation2 + $0x168] sm:$0xff]
        %v1066 = vld [vmem:[#allocation2 + $0x170] sm:$0xff]
        %v1067 = vld [vmem:[#allocation2 + $0x178] sm:$0xff]
        %v1068 = vld [vmem:[#allocation2 + $0x180] sm:$0xff]
        %v1069 = vld [vmem:[#allocation2 + $0x188] sm:$0xff]
        %v1070 = vld [vmem:[#allocation2 + $0x190] sm:$0xff]
        %v1071 = vld [vmem:[#allocation2 + $0x198] sm:$0xff]
        %v1072 = vld [vmem:[#allocation2 + $0x1a0] sm:$0xff]
        %v1073 = vld [vmem:[#allocation2 + $0x1a8] sm:$0xff]
        %v1074 = vld [vmem:[#allocation2 + $0x1b0] sm:$0xff]
        %v1075 = vld [vmem:[#allocation2 + $0x1b8] sm:$0xff]
        %v1076 = vld [vmem:[#allocation2 + $0x1c0] sm:$0xff]
        %v1077 = vld [vmem:[#allocation2 + $0x1c8] sm:$0xff]
        %v1078 = vld [vmem:[#allocation2 + $0x1d0] sm:$0xff]
        %v1079 = vld [vmem:[#allocation2 + $0x1d8] sm:$0xff]
        %v1080 = vld [vmem:[#allocation2 + $0x1e0] sm:$0xff]
        %v1081 = vld [vmem:[#allocation2 + $0x1e8] sm:$0xff]
        %v1082 = vld [vmem:[#allocation2 + $0x1f0] sm:$0xff]
        %v1083 = vld [vmem:[#allocation2 + $0x1f8] sm:$0xff]
        %v1084 = vld [vmem:[#allocation2 + $0x200] sm:$0xff]
        %v1085 = vld [vmem:[#allocation2 + $0x208] sm:$0xff]
        %v1086 = vld [vmem:[#allocation2 + $0x210] sm:$0xff]
        %v1087 = vld [vmem:[#allocation2 + $0x218] sm:$0xff]
        %v1088 = vld [vmem:[#allocation2 + $0x220] sm:$0xff]
        %v1089 = vld [vmem:[#allocation2 + $0x228] sm:$0xff]
        %v1090 = vld [vmem:[#allocation2 + $0x230] sm:$0xff]
        %v1091 = vld [vmem:[#allocation2 + $0x238] sm:$0xff]
        %v1092 = vld [vmem:[#allocation2 + $0x240] sm:$0xff]
        %v1093 = vld [vmem:[#allocation2 + $0x248] sm:$0xff]
        %v1094 = vld [vmem:[#allocation2 + $0x250] sm:$0xff]
        %v1095 = vld [vmem:[#allocation2 + $0x258] sm:$0xff]
        %v1096 = vld [vmem:[#allocation2 + $0x260] sm:$0xff]
        %v1097 = vld [vmem:[#allocation2 + $0x268] sm:$0xff]
        %v1098 = vld [vmem:[#allocation2 + $0x270] sm:$0xff]
        %v1099 = vld [vmem:[#allocation2 + $0x278] sm:$0xff]
        %v1100 = vld [vmem:[#allocation2 + $0x280] sm:$0xff]
        %v1101 = vld [vmem:[#allocation2 + $0x288] sm:$0xff]
        %v1102 = vld [vmem:[#allocation2 + $0x290] sm:$0xff]
        %v1103 = vld [vmem:[#allocation2 + $0x298] sm:$0xff]
        %v1104 = vld [vmem:[#allocation2 + $0x2a0] sm:$0xff]
        %v1105 = vld [vmem:[#allocation2 + $0x2a8] sm:$0xff]
        %v1106 = vld [vmem:[#allocation2 + $0x2b0] sm:$0xff]
        %v1107 = vld [vmem:[#allocation2 + $0x2b8] sm:$0xff]
        %v1108 = vld [vmem:[#allocation2 + $0x2c0] sm:$0xff]
        %v1109 = vld [vmem:[#allocation2 + $0x2c8] sm:$0xff]
        %v1110 = vld [vmem:[#allocation2 + $0x2d0] sm:$0xff]
        %v1111 = vld [vmem:[#allocation2 + $0x2d8] sm:$0xff]
        %v1112 = vld [vmem:[#allocation2 + $0x2e0] sm:$0xff]
        %v1113 = vld [vmem:[#allocation2 + $0x2e8] sm:$0xff]
        %v1114 = vld [vmem:[#allocation2 + $0x2f0] sm:$0xff]
        %v1115 = vld [vmem:[#allocation2 + $0x2f8] sm:$0xff]
        %v1116 = vld [vmem:[#allocation2 + $0x300] sm:$0xff]
        %v1117 = vld [vmem:[#allocation2 + $0x308] sm:$0xff]
        %v1118 = vld [vmem:[#allocation2 + $0x310] sm:$0xff]
        %v1119 = vld [vmem:[#allocation2 + $0x318] sm:$0xff]
        %v1120 = vld [vmem:[#allocation2 + $0x320] sm:$0xff]
        %v1121 = vld [vmem:[#allocation2 + $0x328] sm:$0xff]
        %v1122 = vld [vmem:[#allocation2 + $0x330] sm:$0xff]
        %v1123 = vld [vmem:[#allocation2 + $0x338] sm:$0xff]
        %v1124 = vld [vmem:[#allocation2 + $0x340] sm:$0xff]
        %v1125 = vld [vmem:[#allocation2 + $0x348] sm:$0xff]
        %v1126 = vld [vmem:[#allocation2 + $0x350] sm:$0xff]
        %v1127 = vld [vmem:[#allocation2 + $0x358] sm:$0xff]
        %v1128 = vld [vmem:[#allocation2 + $0x360] sm:$0xff]
        %v1129 = vld [vmem:[#allocation2 + $0x368] sm:$0xff]
        %v1130 = vld [vmem:[#allocation2 + $0x370] sm:$0xff]
        %v1131 = vld [vmem:[#allocation2 + $0x378] sm:$0xff]
        %v1132 = vld [vmem:[#allocation2 + $0x380] sm:$0xff]
        %v1133 = vld [vmem:[#allocation2 + $0x388] sm:$0xff]
        %v1134 = vld [vmem:[#allocation2 + $0x390] sm:$0xff]
        %v1135 = vld [vmem:[#allocation2 + $0x398] sm:$0xff]
        %v1136 = vld [vmem:[#allocation2 + $0x3a0] sm:$0xff]
        %v1137 = vld [vmem:[#allocation2 + $0x3a8] sm:$0xff]
        %v1138 = vld [vmem:[#allocation2 + $0x3b0] sm:$0xff]
        %v1139 = vld [vmem:[#allocation2 + $0x3b8] sm:$0xff]
        %v1140 = vld [vmem:[#allocation2 + $0x3c0] sm:$0xff]
        %v1141 = vld [vmem:[#allocation2 + $0x3c8] sm:$0xff]
        %v1142 = vld [vmem:[#allocation2 + $0x3d0] sm:$0xff]
        %v1143 = vld [vmem:[#allocation2 + $0x3d8] sm:$0xff]
        %v1144 = vld [vmem:[#allocation2 + $0x3e0] sm:$0xff]
        %v1145 = vld [vmem:[#allocation2 + $0x3e8] sm:$0xff]
        %v1146 = vld [vmem:[#allocation2 + $0x3f0] sm:$0xff]
        %v1147 = vld [vmem:[#allocation2 + $0x3f8] sm:$0xff]
        %v1148 = vld [vmem:[#allocation2 + $0x400] sm:$0xff]
        %v1149 = vld [vmem:[#allocation2 + $0x408] sm:$0xff]
        %v1150 = vld [vmem:[#allocation2 + $0x410] sm:$0xff]
        %v1151 = vld [vmem:[#allocation2 + $0x418] sm:$0xff]
        %v1152 = vld [vmem:[#allocation2 + $0x420] sm:$0xff]
        %v1153 = vld [vmem:[#allocation2 + $0x428] sm:$0xff]
        %v1154 = vld [vmem:[#allocation2 + $0x430] sm:$0xff]
        %v1155 = vld [vmem:[#allocation2 + $0x438] sm:$0xff]
        %v1156 = vld [vmem:[#allocation2 + $0x440] sm:$0xff]
        %v1157 = vld [vmem:[#allocation2 + $0x448] sm:$0xff]
        %v1158 = vld [vmem:[#allocation2 + $0x450] sm:$0xff]
        %v1159 = vld [vmem:[#allocation2 + $0x458] sm:$0xff]
        %v1160 = vld [vmem:[#allocation2 + $0x460] sm:$0xff]
        %v1161 = vld [vmem:[#allocation2 + $0x468] sm:$0xff]
        %v1162 = vld [vmem:[#allocation2 + $0x470] sm:$0xff]
        %v1163 = vld [vmem:[#allocation2 + $0x478] sm:$0xff]
        %v1164 = vld [vmem:[#allocation2 + $0x480] sm:$0xff]
        %v1165 = vld [vmem:[#allocation2 + $0x488] sm:$0xff]
        %v1166 = vld [vmem:[#allocation2 + $0x490] sm:$0xff]
        %v1167 = vld [vmem:[#allocation2 + $0x498] sm:$0xff]
        %v1168 = vld [vmem:[#allocation2 + $0x4a0] sm:$0xff]
        %v1169 = vld [vmem:[#allocation2 + $0x4a8] sm:$0xff]
        %v1170 = vld [vmem:[#allocation2 + $0x4b0] sm:$0xff]
        %v1171 = vld [vmem:[#allocation2 + $0x4b8] sm:$0xff]
        %v1172 = vld [vmem:[#allocation2 + $0x4c0] sm:$0xff]
        %v1173 = vld [vmem:[#allocation2 + $0x4c8] sm:$0xff]
        %v1174 = vld [vmem:[#allocation2 + $0x4d0] sm:$0xff]
        %v1175 = vld [vmem:[#allocation2 + $0x4d8] sm:$0xff]
        %v1176 = vld [vmem:[#allocation2 + $0x4e0] sm:$0xff]
        %v1177 = vld [vmem:[#allocation2 + $0x4e8] sm:$0xff]
        %v1178 = vld [vmem:[#allocation2 + $0x4f0] sm:$0xff]
        %v1179 = vld [vmem:[#allocation2 + $0x4f8] sm:$0xff]
        %v1180 = vld [vmem:[#allocation2 + $0x500] sm:$0xff]
        %v1181 = vld [vmem:[#allocation2 + $0x508] sm:$0xff]
        %v1182 = vld [vmem:[#allocation2 + $0x510] sm:$0xff]
        %v1183 = vld [vmem:[#allocation2 + $0x518] sm:$0xff]
        %v1184 = vld [vmem:[#allocation2 + $0x520] sm:$0xff]
        %v1185 = vld [vmem:[#allocation2 + $0x528] sm:$0xff]
        %v1186 = vld [vmem:[#allocation2 + $0x530] sm:$0xff]
        %v1187 = vld [vmem:[#allocation2 + $0x538] sm:$0xff]
        %v1188 = vld [vmem:[#allocation2 + $0x540] sm:$0xff]
        %v1189 = vld [vmem:[#allocation2 + $0x548] sm:$0xff]
        %v1190 = vld [vmem:[#allocation2 + $0x550] sm:$0xff]
        %v1191 = vld [vmem:[#allocation2 + $0x558] sm:$0xff]
        %v1192 = vld [vmem:[#allocation2 + $0x560] sm:$0xff]
        %v1193 = vld [vmem:[#allocation2 + $0x568] sm:$0xff]
        %v1194 = vld [vmem:[#allocation2 + $0x570] sm:$0xff]
        %v1195 = vld [vmem:[#allocation2 + $0x578] sm:$0xff]
        %v1196 = vld [vmem:[#allocation2 + $0x580] sm:$0xff]
        %v1197 = vld [vmem:[#allocation2 + $0x588] sm:$0xff]
        %v1198 = vld [vmem:[#allocation2 + $0x590] sm:$0xff]
        %v1199 = vld [vmem:[#allocation2 + $0x598] sm:$0xff]
        %v1200 = vld [vmem:[#allocation2 + $0x5a0] sm:$0xff]
        %v1201 = vld [vmem:[#allocation2 + $0x5a8] sm:$0xff]
        %v1202 = vld [vmem:[#allocation2 + $0x5b0] sm:$0xff]
        %v1203 = vld [vmem:[#allocation2 + $0x5b8] sm:$0xff]
        %v1204 = vld [vmem:[#allocation2 + $0x5c0] sm:$0xff]
        %v1205 = vld [vmem:[#allocation2 + $0x5c8] sm:$0xff]
        %v1206 = vld [vmem:[#allocation2 + $0x5d0] sm:$0xff]
        %v1207 = vld [vmem:[#allocation2 + $0x5d8] sm:$0xff]
        %v1208 = vld [vmem:[#allocation2 + $0x5e0] sm:$0xff]
        %v1209 = vld [vmem:[#allocation2 + $0x5e8] sm:$0xff]
        %v1210 = vld [vmem:[#allocation2 + $0x5f0] sm:$0xff]
        %v1211 = vld [vmem:[#allocation2 + $0x5f8] sm:$0xff]
        %v1212 = vld [vmem:[#allocation2 + $0x600] sm:$0xff]
        %v1213 = vld [vmem:[#allocation2 + $0x608] sm:$0xff]
        %v1214 = vld [vmem:[#allocation2 + $0x610] sm:$0xff]
        %v1215 = vld [vmem:[#allocation2 + $0x618] sm:$0xff]
        %v1216 = vld [vmem:[%s2] sm:$0xff]
        %1218 = vset.pattern.permute.xlu0 0
        %1219 = vperm.xlu0 %1218, %v1216
        %v1220 = vpop.permute.xlu0 %1219
        %vm1222 = vcmask 64512
        %v1224 = vsel %vm1222, %v1019, 0
        %1226 = vmatprep.subr.mxu0 %v1021
        %1227 = vmatpush1.msra.mxu0 %v1020
        %1228 = vmatprep.subr.mxu0 %v1025
        %1229 = vmatpush1.msra.mxu0 %v1024
        %1230 = vmatprep.subr.mxu0 %v1029
        %1231 = vmatpush1.msra.mxu0 %v1028
        %1232 = vmatprep.subr.mxu0 %v1033
        %1233 = vmatpush1.msra.mxu0 %v1032
        %1234 = vmatprep.subr.mxu0 %v1037
        %1235 = vmatpush1.msra.mxu0 %v1036
        %1236 = vmatprep.subr.mxu0 %v1041
        %1237 = vmatpush1.msra.mxu0 %v1040
        %1238 = vmatprep.subr.mxu0 %v1045
        %1239 = vmatpush1.msra.mxu0 %v1044
        %1240 = vmatprep.subr.mxu0 %v1049
        %1241 = vmatpush1.msra.mxu0 %v1048
        %1242 = vmatprep.subr.mxu0 %v1053
        %1243 = vmatpush1.msra.mxu0 %v1052
        %1244 = vmatprep.subr.mxu0 %v1057
        %1245 = vmatpush1.msra.mxu0 %v1056
        %1246 = vmatprep.subr.mxu0 %v1061
        %1247 = vmatpush1.msra.mxu0 %v1060
        %1248 = vmatprep.subr.mxu0 %v1065
        %1249 = vmatpush1.msra.mxu0 %v1064
        %1250 = vmatprep.subr.mxu0 %v1069
        %1251 = vmatpush1.msra.mxu0 %v1068
        %1252 = vmatprep.subr.mxu0 %v1073
        %1253 = vmatpush1.msra.mxu0 %v1072
        %1254 = vmatprep.subr.mxu0 %v1077
        %1255 = vmatpush1.msra.mxu0 %v1076
        %1256 = vmatprep.subr.mxu0 %v1081
        %1257 = vmatpush1.msra.mxu0 %v1080
        %1258 = vmatprep.subr.mxu0 %v1085
        %1259 = vmatpush1.msra.mxu0 %v1084
        %1260 = vmatprep.subr.mxu0 %v1089
        %1261 = vmatpush1.msra.mxu0 %v1088
        %1262 = vmatprep.subr.mxu0 %v1093
        %1263 = vmatpush1.msra.mxu0 %v1092
        %1264 = vmatprep.subr.mxu0 %v1097
        %1265 = vmatpush1.msra.mxu0 %v1096
        %1266 = vmatprep.subr.mxu0 %v1101
        %1267 = vmatpush1.msra.mxu0 %v1100
        %1268 = vmatprep.subr.mxu0 %v1105
        %1269 = vmatpush1.msra.mxu0 %v1104
        %1270 = vmatprep.subr.mxu0 %v1109
        %1271 = vmatpush1.msra.mxu0 %v1108
        %1272 = vmatprep.subr.mxu0 %v1113
        %1273 = vmatpush1.msra.mxu0 %v1112
        %1274 = vmatprep.subr.mxu0 %v1117
        %1275 = vmatpush1.msra.mxu0 %v1116
        %1276 = vmatprep.subr.mxu0 %v1121
        %1277 = vmatpush1.msra.mxu0 %v1120
        %1278 = vmatprep.subr.mxu0 %v1125
        %1279 = vmatpush1.msra.mxu0 %v1124
        %1280 = vmatprep.subr.mxu0 %v1129
        %1281 = vmatpush1.msra.mxu0 %v1128
        %1282 = vmatprep.subr.mxu0 %v1133
        %1283 = vmatpush1.msra.mxu0 %v1132
        %1284 = vmatprep.subr.mxu0 %v1137
        %1285 = vmatpush1.msra.mxu0 %v1136
        %1286 = vmatprep.subr.mxu0 %v1141
        %1287 = vmatpush1.msra.mxu0 %v1140
        %1288 = vmatprep.subr.mxu0 %v1145
        %1289 = vmatpush1.msra.mxu0 %v1144
        %1290 = vmatprep.mubr.f32.mxu0 %v1017
        %1291 = vmatmul.mubr.f32.gmra.mrb[0].mxu0 %v1016
        %v1292 = vpop.f32.mrb[0].mxu0
        %v1293 = vadd.f32 %v1220, %v1292
        %v1294 = vpop.f32.mrb[0].mxu0
        %v1295 = vadd.f32 %v1220, %v1294
        %1296 = vdwg.mxu0
        %1297 = vmatprep.subr.mxu0 %v1149
        %1298 = vmatpush1.msra.mxu0 %v1148
        %1299 = vmatprep.subr.mxu0 %v1153
        %1300 = vmatpush1.msra.mxu0 %v1152
        %1301 = vmatprep.subr.mxu0 %v1157
        %1302 = vmatpush1.msra.mxu0 %v1156
        %1303 = vmatprep.subr.mxu0 %v1161
        %1304 = vmatpush1.msra.mxu0 %v1160
        %1305 = vmatprep.subr.mxu0 %v1165
        %1306 = vmatpush1.msra.mxu0 %v1164
        %1307 = vmatprep.subr.mxu0 %v1169
        %1308 = vmatpush1.msra.mxu0 %v1168
        %1309 = vmatprep.subr.mxu0 %v1173
        %1310 = vmatpush1.msra.mxu0 %v1172
        %1311 = vmatprep.subr.mxu0 %v1177
        %1312 = vmatpush1.msra.mxu0 %v1176
        %1313 = vmatprep.subr.mxu0 %v1181
        %1314 = vmatpush1.msra.mxu0 %v1180
        %1315 = vmatprep.subr.mxu0 %v1185
        %1316 = vmatpush1.msra.mxu0 %v1184
        %1317 = vmatprep.subr.mxu0 %v1189
        %1318 = vmatpush1.msra.mxu0 %v1188
        %1319 = vmatprep.subr.mxu0 %v1193
        %1320 = vmatpush1.msra.mxu0 %v1192
        %1321 = vmatprep.subr.mxu0 %v1197
        %1322 = vmatpush1.msra.mxu0 %v1196
        %1323 = vmatprep.subr.mxu0 %v1201
        %1324 = vmatpush1.msra.mxu0 %v1200
        %1325 = vmatprep.subr.mxu0 %v1205
        %1326 = vmatpush1.msra.mxu0 %v1204
        %1327 = vmatprep.subr.mxu0 %v1209
        %1328 = vmatpush1.msra.mxu0 %v1208
        %1329 = vmatprep.subr.mxu0 %v1213
        %1330 = vmatpush1.msra.mxu0 %v1212
        %1331 = vmatprep.subr.mxu0 0.0
        %1332 = vmatpush1.msra.mxu0 0.0
        %1333 = vmatprep.subr.mxu0 0.0
        %1334 = vmatpush1.msra.mxu0 0.0
        %1335 = vmatprep.subr.mxu0 0.0
        %1336 = vmatpush1.msra.mxu0 0.0
        %1337 = vmatprep.subr.mxu0 0.0
        %1338 = vmatpush1.msra.mxu0 0.0
        %1339 = vmatprep.subr.mxu0 0.0
        %1340 = vmatpush1.msra.mxu0 0.0
        %1341 = vmatprep.subr.mxu0 0.0
        %1342 = vmatpush1.msra.mxu0 0.0
        %1343 = vmatprep.subr.mxu0 0.0
        %1344 = vmatpush1.msra.mxu0 0.0
        %1345 = vmatprep.subr.mxu0 0.0
        %1346 = vmatpush1.msra.mxu0 0.0
        %1347 = vmatprep.subr.mxu0 0.0
        %1348 = vmatpush1.msra.mxu0 0.0
        %1349 = vmatprep.subr.mxu0 0.0
        %1350 = vmatpush1.msra.mxu0 0.0
        %1351 = vmatprep.subr.mxu0 0.0
        %1352 = vmatpush1.msra.mxu0 0.0
        %1353 = vmatprep.subr.mxu0 0.0
        %1354 = vmatpush1.msra.mxu0 0.0
        %1355 = vmatprep.subr.mxu0 0.0
        %1356 = vmatpush1.msra.mxu0 0.0
        %1357 = vmatprep.subr.mxu0 0.0
        %1358 = vmatpush1.msra.mxu0 0.0
        %1359 = vmatprep.subr.mxu0 0.0
        %1360 = vmatpush1.msra.mxu0 0.0
        %1361 = vmatprep.mubr.f32.mxu0 %v1224
        %1362 = vmatmul.mubr.f32.gmra.mrb[0].mxu0 %v1018
        %v1363 = vpop.f32.mrb[0].mxu0
        %v1364 = vadd.f32 %v1293, %v1363
        %v1365 = vpop.f32.mrb[0].mxu0
        %v1366 = vadd.f32 %v1295, %v1365
        %1367 = vdwg.mxu0
        %1368 = vmatprep.subr.mxu0 %v1023
        %1369 = vmatpush1.msra.mxu0 %v1022
        %1370 = vmatprep.subr.mxu0 %v1027
        %1371 = vmatpush1.msra.mxu0 %v1026
        %1372 = vmatprep.subr.mxu0 %v1031
        %1373 = vmatpush1.msra.mxu0 %v1030
        %1374 = vmatprep.subr.mxu0 %v1035
        %1375 = vmatpush1.msra.mxu0 %v1034
        %1376 = vmatprep.subr.mxu0 %v1039
        %1377 = vmatpush1.msra.mxu0 %v1038
        %1378 = vmatprep.subr.mxu0 %v1043
        %1379 = vmatpush1.msra.mxu0 %v1042
        %1380 = vmatprep.subr.mxu0 %v1047
        %1381 = vmatpush1.msra.mxu0 %v1046
        %1382 = vmatprep.subr.mxu0 %v1051
        %1383 = vmatpush1.msra.mxu0 %v1050
        %1384 = vmatprep.subr.mxu0 %v1055
        %1385 = vmatpush1.msra.mxu0 %v1054
        %1386 = vmatprep.subr.mxu0 %v1059
        %1387 = vmatpush1.msra.mxu0 %v1058
        %1388 = vmatprep.subr.mxu0 %v1063
        %1389 = vmatpush1.msra.mxu0 %v1062
        %1390 = vmatprep.subr.mxu0 %v1067
        %1391 = vmatpush1.msra.mxu0 %v1066
        %1392 = vmatprep.subr.mxu0 %v1071
        %1393 = vmatpush1.msra.mxu0 %v1070
        %1394 = vmatprep.subr.mxu0 %v1075
        %1395 = vmatpush1.msra.mxu0 %v1074
        %1396 = vmatprep.subr.mxu0 %v1079
        %1397 = vmatpush1.msra.mxu0 %v1078
        %1398 = vmatprep.subr.mxu0 %v1083
        %1399 = vmatpush1.msra.mxu0 %v1082
        %1400 = vmatprep.subr.mxu0 %v1087
        %1401 = vmatpush1.msra.mxu0 %v1086
        %1402 = vmatprep.subr.mxu0 %v1091
        %1403 = vmatpush1.msra.mxu0 %v1090
        %1404 = vmatprep.subr.mxu0 %v1095
        %1405 = vmatpush1.msra.mxu0 %v1094
        %1406 = vmatprep.subr.mxu0 %v1099
        %1407 = vmatpush1.msra.mxu0 %v1098
        %1408 = vmatprep.subr.mxu0 %v1103
        %1409 = vmatpush1.msra.mxu0 %v1102
        %1410 = vmatprep.subr.mxu0 %v1107
        %1411 = vmatpush1.msra.mxu0 %v1106
        %1412 = vmatprep.subr.mxu0 %v1111
        %1413 = vmatpush1.msra.mxu0 %v1110
        %1414 = vmatprep.subr.mxu0 %v1115
        %1415 = vmatpush1.msra.mxu0 %v1114
        %1416 = vmatprep.subr.mxu0 %v1119
        %1417 = vmatpush1.msra.mxu0 %v1118
        %1418 = vmatprep.subr.mxu0 %v1123
        %1419 = vmatpush1.msra.mxu0 %v1122
        %1420 = vmatprep.subr.mxu0 %v1127
        %1421 = vmatpush1.msra.mxu0 %v1126
        %1422 = vmatprep.subr.mxu0 %v1131
        %1423 = vmatpush1.msra.mxu0 %v1130
        %1424 = vmatprep.subr.mxu0 %v1135
        %1425 = vmatpush1.msra.mxu0 %v1134
        %1426 = vmatprep.subr.mxu0 %v1139
        %1427 = vmatpush1.msra.mxu0 %v1138
        %1428 = vmatprep.subr.mxu0 %v1143
        %1429 = vmatpush1.msra.mxu0 %v1142
        %1430 = vmatprep.subr.mxu0 %v1147
        %1431 = vmatpush1.msra.mxu0 %v1146
        %1432 = vmatprep.mubr.f32.mxu0 %v1017
        %1433 = vmatmul.mubr.f32.gmra.mrb[0].mxu0 %v1016
        %v1434 = vpop.f32.mrb[0].mxu0
        %v1435 = vadd.f32 %v1220, %v1434
        %v1436 = vpop.f32.mrb[0].mxu0
        %v1437 = vadd.f32 %v1220, %v1436
        %1438 = vdwg.mxu0
        %1439 = vmatprep.subr.mxu0 %v1151
        %1440 = vmatpush1.msra.mxu0 %v1150
        %1441 = vmatprep.subr.mxu0 %v1155
        %1442 = vmatpush1.msra.mxu0 %v1154
        %1443 = vmatprep.subr.mxu0 %v1159
        %1444 = vmatpush1.msra.mxu0 %v1158
        %1445 = vmatprep.subr.mxu0 %v1163
        %1446 = vmatpush1.msra.mxu0 %v1162
        %1447 = vmatprep.subr.mxu0 %v1167
        %1448 = vmatpush1.msra.mxu0 %v1166
        %1449 = vmatprep.subr.mxu0 %v1171
        %1450 = vmatpush1.msra.mxu0 %v1170
        %1451 = vmatprep.subr.mxu0 %v1175
        %1452 = vmatpush1.msra.mxu0 %v1174
        %1453 = vmatprep.subr.mxu0 %v1179
        %1454 = vmatpush1.msra.mxu0 %v1178
        %1455 = vmatprep.subr.mxu0 %v1183
        %1456 = vmatpush1.msra.mxu0 %v1182
        %1457 = vmatprep.subr.mxu0 %v1187
        %1458 = vmatpush1.msra.mxu0 %v1186
        %1459 = vmatprep.subr.mxu0 %v1191
        %1460 = vmatpush1.msra.mxu0 %v1190
        %1461 = vmatprep.subr.mxu0 %v1195
        %1462 = vmatpush1.msra.mxu0 %v1194
        %1463 = vmatprep.subr.mxu0 %v1199
        %1464 = vmatpush1.msra.mxu0 %v1198
        %1465 = vmatprep.subr.mxu0 %v1203
        %1466 = vmatpush1.msra.mxu0 %v1202
        %1467 = vmatprep.subr.mxu0 %v1207
        %1468 = vmatpush1.msra.mxu0 %v1206
        %1469 = vmatprep.subr.mxu0 %v1211
        %1470 = vmatpush1.msra.mxu0 %v1210
        %1471 = vmatprep.subr.mxu0 %v1215
        %1472 = vmatpush1.msra.mxu0 %v1214
        %1473 = vmatprep.subr.mxu0 0.0
        %1474 = vmatpush1.msra.mxu0 0.0
        %1475 = vmatprep.subr.mxu0 0.0
        %1476 = vmatpush1.msra.mxu0 0.0
        %1477 = vmatprep.subr.mxu0 0.0
        %1478 = vmatpush1.msra.mxu0 0.0
        %1479 = vmatprep.subr.mxu0 0.0
        %1480 = vmatpush1.msra.mxu0 0.0
        %1481 = vmatprep.subr.mxu0 0.0
        %1482 = vmatpush1.msra.mxu0 0.0
        %1483 = vmatprep.subr.mxu0 0.0
        %1484 = vmatpush1.msra.mxu0 0.0
        %1485 = vmatprep.subr.mxu0 0.0
        %1486 = vmatpush1.msra.mxu0 0.0
        %1487 = vmatprep.subr.mxu0 0.0
        %1488 = vmatpush1.msra.mxu0 0.0
        %1489 = vmatprep.subr.mxu0 0.0
        %1490 = vmatpush1.msra.mxu0 0.0
        %1491 = vmatprep.subr.mxu0 0.0
        %1492 = vmatpush1.msra.mxu0 0.0
        %1493 = vmatprep.subr.mxu0 0.0
        %1494 = vmatpush1.msra.mxu0 0.0
        %1495 = vmatprep.subr.mxu0 0.0
        %1496 = vmatpush1.msra.mxu0 0.0
        %1497 = vmatprep.subr.mxu0 0.0
        %1498 = vmatpush1.msra.mxu0 0.0
        %1499 = vmatprep.subr.mxu0 0.0
        %1500 = vmatpush1.msra.mxu0 0.0
        %1501 = vmatprep.subr.mxu0 0.0
        %1502 = vmatpush1.msra.mxu0 0.0
        %1503 = vmatprep.mubr.f32.mxu0 %v1224
        %1504 = vmatmul.mubr.f32.gmra.mrb[0].mxu0 %v1018
        %v1505 = vpop.f32.mrb[0].mxu0
        %v1506 = vadd.f32 %v1435, %v1505
        %v1507 = vpop.f32.mrb[0].mxu0
        %v1508 = vadd.f32 %v1437, %v1507
        %1509 = vdwg.mxu0
        %1510 = vst [vmem:[%s213] sm:$0xff] %v1364
        %1511 = vst [vmem:[%s213 + $0x8] sm:$0xff] %v1366
        %1512 = vst [vmem:[%s213 + $0x10] sm:$0xff] %v1506
        %1513 = vst [vmem:[%s213 + $0x18] sm:$0xff] %v1508
        %s1514 = sand.u32 %s111, 1
        %s1515 = scalar_lea.sflag [#allocation5], %s1514
        %s1516 = sand.u32 %s111, 1
        %s1517 = smul.addr %s1516, 32
        %s1518 = scalar_lea.vmem [#allocation8], %s1517
        // Predicated region
        $region41: #{tpu_custom_call.1} parent=31 // pred_check
          %p1519 = pneg %p121
        $region42: #{tpu_custom_call.1} parent=31 // pred_check_branch
          %1521 = sbr.rel (%p1519) target = $region44
        $region43: #{tpu_custom_call.1} parent=31 // pred_region
          %s1522 = smul.u32 4, %s26
          %s1524 = ssub.s32 512, 512
          %1525 = vsyncadd %s1515, %s1524
          %s1526 = smul.addr %s25, 4
          %s1527 = sadd.s32 %s1522, %s1526
          %s1528 = smul.addr %s1527, 128
          %s1529 = scalar_lea.hbm %s3, %s1528
          %s1531 = sshll.u32 %s1518, 4
          %s1532 = int_to_ptr.vmem [resolvable:$true] %s1531
          %1534 = dma.vmem_to_hbm [thread:$0]  %s1532, 512, %s1529, %s1515
        $region44: #{tpu_custom_call.1} parent=31 // pred_fallthru
          _
      $region32: #{tpu_custom_call.1} parent=5 // pred_fallthru
        _
      %p1535 = scmp.le.s32.totalorder 2, %s16
      // Predicated region
      $region45: #{tpu_custom_call.1} parent=5 // pred_check
        %p1536 = pneg %p1535
      $region46: #{tpu_custom_call.1} parent=5 // pred_check_branch
        %1538 = sbr.rel (%p1536) target = $region48
      $region47: #{tpu_custom_call.1} parent=5 // pred_region
        %s1539 = ssub.s32 %s16, 2
        // Predicated region
        $region49: #{tpu_custom_call.1} parent=47 // pred_check
          %p1540 = pneg %p127
        $region50: #{tpu_custom_call.1} parent=47 // pred_check_branch
          %1542 = sbr.rel (%p1540) target = $region52
        $region51: #{tpu_custom_call.1} parent=47 // pred_region
          %s1543 = sand.u32 %s112, 1
          %s1544 = scalar_lea.sflag [#allocation5], %s1543
          %s1545 = sand.u32 %s112, 1
          %s1546 = smul.addr %s1545, 32
          %s1547 = scalar_lea.vmem [#allocation8], %s1546
          %1548 = dma.done %s1544, 512
        $region52: #{tpu_custom_call.1} parent=47 // pred_fallthru
          _
      $region48: #{tpu_custom_call.1} parent=5 // pred_fallthru
        _
    $region6: #{tpu_custom_call.1} parent=1 // loop_footer
      %s20 = sadd.s32 1, %s16
    $region7: #{tpu_custom_call.1} parent=1 // loop_footer_branch
      %15 = sbr.rel target = $region3
    $region8: #{tpu_custom_call.1} parent=1 // loop_exit
      _
    %1549 = vsyncpa [#allocation4], 1
    %s1550 = scalar_lea.sflag [#allocation4], 1
    %1551 = vsyncpa %s1550, 1
    %1552 = vsyncpa [#allocation7], 1
    %1553 = vsyncpa [#allocation5], 1
    %s1554 = scalar_lea.sflag [#allocation5], 1
    %1555 = vsyncpa %s1554, 1

</llo_original>
